<compile_context>
chip_gen: v5e
topology: v5e:2x2
jax: 0.10.0
libtpu: 0.0.40
codegen_flags: <defaults>
</compile_context>

<pallas_src>
import functools

import jax
import jax.numpy as jnp
from jax import lax
from jax.experimental import pallas as pl
from jax.experimental.pallas import tpu as pltpu

EPS = 1e-5        # PyTorch BatchNorm1d default eps
LANE = 128
SUBLANE = 8


def _round_up(n, m):
    return ((n + m - 1) // m) * m


def _pad_to(x, axis, target):
    pad = target - x.shape[axis]
    if pad <= 0:
        return x
    widths = [(0, 0)] * x.ndim
    widths[axis] = (0, pad)
    return jnp.pad(x, widths)


# --------------------------- fused Pallas kernel -----------------------------

def deep_llm_kernel(tok_ref, table_ref, w_in_ref, b_in_ref,
                    w_blk_ref, b_blk_ref, w_out_ref, b_out_ref,
                    o_ref, h_scr):
    """Grid axis = blocks of residual layers (streamed from HBM).

      tok_ref   : VMEM (Bp, S)  int32 token ids (batch padded with token 0)
      table_ref : VMEM (Vp, Ep) bf16 embedding table (row 0 and padded rows are zero)
      w_in_ref  : VMEM (Ep, Hp) bf16,  b_in_ref : (1, Hp) f32
      w_blk_ref : VMEM (lps, 2, Hp, Hp) bf16  -- BN-folded [W1', W2'] for this step
      b_blk_ref : VMEM (lps, 2, 1,  Hp) f32   -- BN-folded [b1', b2'] for this step
      w_out_ref : VMEM (Hp, Op) bf16,  b_out_ref: (1, Op) f32
      o_ref     : VMEM (Bp, Op) f32 output (lane-dense; caller slices to (B, O))
      h_scr     : VMEM (Bp, Hp) f32 persistent activation across grid steps
    """
    step = pl.program_id(0)
    Bp, S = tok_ref.shape
    Vp = table_ref.shape[0]
    lps = w_blk_ref.shape[0]

    # ---- step 0: embedding mean-pool (counts @ table on the MXU) + input Linear ----
    @pl.when(step == 0)
    def _init():
        tok = tok_ref[...]                                              # (Bp, S)
        lane_ids = lax.broadcasted_iota(jnp.int32, (Bp, Vp), 1)
        counts = jnp.zeros((Bp, Vp), jnp.float32)
        for s in range(S):                                              # S cheap VPU compares
            counts = counts + (lane_ids == tok[:, s:s + 1]).astype(jnp.float32)
        counts = counts * jnp.float32(1.0 / S)                          # mean over sequence
        # counts/S are exact dyadic rationals -> lossless bf16 cast for the MXU.
        pooled = jnp.dot(counts.astype(jnp.bfloat16), table_ref[...],
                         preferred_element_type=jnp.float32)            # (Bp, Ep)
        h_scr[...] = (jnp.dot(pooled.astype(jnp.bfloat16), w_in_ref[...],
                              preferred_element_type=jnp.float32)
                      + b_in_ref[...])                                  # (Bp, Hp)

    # ---- lps residual blocks for this grid step (BN folded; Dropout eval == id) ----
    h = h_scr[...]
    for j in range(lps):
        out = (jnp.dot(h.astype(jnp.bfloat16), w_blk_ref[j, 0],
                       preferred_element_type=jnp.float32) + b_blk_ref[j, 0])
        out = jnp.maximum(out, 0.0)
        out = (jnp.dot(out.astype(jnp.bfloat16), w_blk_ref[j, 1],
                       preferred_element_type=jnp.float32) + b_blk_ref[j, 1])
        h = jnp.maximum(out + h, 0.0)
    h_scr[...] = h

    # ---- last step: output Linear, lane-dense store ----
    @pl.when(step == pl.num_programs(0) - 1)
    def _final():
        o_ref[...] = (jnp.dot(h.astype(jnp.bfloat16), w_out_ref[...],
                              preferred_element_type=jnp.float32)
                      + b_out_ref[...])


def deep_llm_pallas(tokens_p, kp, layers_per_step):
    Bp, S = tokens_p.shape
    Vp, Ep = kp["table"].shape
    Hp = kp["w_in"].shape[1]
    Op = kp["w_out"].shape[1]
    L_pad = kp["w_stack"].shape[0]
    assert L_pad % layers_per_step == 0
    num_steps = L_pad // layers_per_step

    return pl.pallas_call(
        deep_llm_kernel,
        out_shape=jax.ShapeDtypeStruct((Bp, Op), jnp.float32),
        grid_spec=pltpu.PrefetchScalarGridSpec(
            num_scalar_prefetch=0,
            grid=(num_steps,),
            in_specs=[
                pl.BlockSpec((Bp, S), lambda i: (0, 0)),                 # tokens (resident)
                pl.BlockSpec((Vp, Ep), lambda i: (0, 0)),                # embedding table
                pl.BlockSpec((Ep, Hp), lambda i: (0, 0)),                # w_in
                pl.BlockSpec((1, Hp), lambda i: (0, 0)),                 # b_in
                pl.BlockSpec((layers_per_step, 2, Hp, Hp),
                             lambda i: (i, 0, 0, 0)),                    # streamed weights
                pl.BlockSpec((layers_per_step, 2, 1, Hp),
                             lambda i: (i, 0, 0, 0)),                    # streamed biases
                pl.BlockSpec((Hp, Op), lambda i: (0, 0)),                # w_out
                pl.BlockSpec((1, Op), lambda i: (0, 0)),                 # b_out
            ],
            out_specs=pl.BlockSpec((Bp, Op), lambda i: (0, 0)),
            scratch_shapes=[pltpu.VMEM((Bp, Hp), jnp.float32)],          # persistent h
        ),
        compiler_params=pltpu.CompilerParams(
            # Layers are serially dependent -> the single grid axis is "arbitrary".
            # TODO(synk): for large B on v7x, add a leading "parallel" batch axis so the
            # second TensorCore is used.
            dimension_semantics=("arbitrary",)),
    )(tokens_p, kp["table"], kp["w_in"], kp["b_in"],
      kp["w_stack"], kp["b_stack"], kp["w_out"], kp["b_out"])


@functools.partial(jax.jit, static_argnames=("out_dim", "layers_per_step"))
def deep_llm_forward(tokens, kernel_params, out_dim, layers_per_step):
    B = tokens.shape[0]
    Bp = max(_round_up(B, SUBLANE), SUBLANE)            # fill at least one sublane group
    tok_p = _pad_to(tokens.astype(jnp.int32), 0, Bp)    # pad rows with token 0 (zero row)
    out_p = deep_llm_pallas(tok_p, kernel_params, layers_per_step)
    return out_p[:B, :out_dim]


# --------------------------- parameter init / fold / pad ---------------------

def init_params(key, V, E, H, O, L):
    """Raw PyTorch-equivalent params (Linear weights stored (in, out))."""
    ks = jax.random.split(key, 9)
    table = jax.random.normal(ks[0], (V, E), jnp.float32)
    table = table.at[0].set(0.0)                        # padding_idx=0 row = 0

    bnd_e = 1.0 / float(E) ** 0.5
    w_in = jax.random.uniform(ks[1], (E, H), jnp.float32, -bnd_e, bnd_e)
    b_in = jax.random.uniform(ks[2], (H,), jnp.float32, -bnd_e, bnd_e)

    bnd_h = 1.0 / float(H) ** 0.5
    w1 = jax.random.uniform(ks[3], (L, H, H), jnp.float32, -bnd_h, bnd_h)
    w2 = jax.random.uniform(ks[4], (L, H, H), jnp.float32, -bnd_h, bnd_h)
    b1 = jax.random.uniform(ks[5], (L, H), jnp.float32, -bnd_h, bnd_h)
    b2 = jax.random.uniform(ks[6], (L, H), jnp.float32, -bnd_h, bnd_h)

    # freshly-initialized BatchNorm1d state (eval): gamma=1, beta=0, mean=0, var=1
    gamma = jnp.ones((L, 2, H), jnp.float32)
    beta = jnp.zeros((L, 2, H), jnp.float32)
    mean = jnp.zeros((L, 2, H), jnp.float32)
    var = jnp.ones((L, 2, H), jnp.float32)

    w_out = jax.random.uniform(ks[7], (H, O), jnp.float32, -bnd_h, bnd_h)
    b_out = jax.random.uniform(ks[8], (O,), jnp.float32, -bnd_h, bnd_h)

    return dict(table=table, w_in=w_in, b_in=b_in,
                w1=w1, b1=b1, w2=w2, b2=b2,
                gamma=gamma, beta=beta, mean=mean, var=var,
                w_out=w_out, b_out=b_out)


def fold_and_pad_params(p, layers_per_step):
    """Fold eval-mode BatchNorm into the Linears, pad lane-dense, cast weights to bf16."""
    V, E = p["table"].shape
    H = p["w_in"].shape[1]
    O = p["w_out"].shape[1]
    L = p["w1"].shape[0]
    Vp = _round_up(V, LANE)
    Ep = _round_up(E, LANE)
    Hp = _round_up(H, LANE)   # NOTE: pad to 256 when H scales (v6e/v7x 2x256^2 MXU)
    Op = _round_up(O, LANE)
    L_pad = _round_up(L, layers_per_step)

    # BN fold (PyTorch eps): y = x@(W*s) + ((b-mean)*s + beta), s = gamma*rsqrt(var+eps)
    s1 = p["gamma"][:, 0] * lax.rsqrt(p["var"][:, 0] + EPS)
    s2 = p["gamma"][:, 1] * lax.rsqrt(p["var"][:, 1] + EPS)
    w1f = p["w1"] * s1[:, None, :]
    w2f = p["w2"] * s2[:, None, :]
    b1f = (p["b1"] - p["mean"][:, 0]) * s1 + p["beta"][:, 0]
    b2f = (p["b2"] - p["mean"][:, 1]) * s2 + p["beta"][:, 1]

    table_p = _pad_to(_pad_to(p["table"], 0, Vp), 1, Ep).astype(jnp.bfloat16)
    w_in_p = _pad_to(_pad_to(p["w_in"], 0, Ep), 1, Hp).astype(jnp.bfloat16)
    b_in_p = _pad_to(p["b_in"][None, :], 1, Hp)

    # Stack per-layer params; pad the layer axis with zero "identity" layers if needed
    # (zero weights + zero bias -> h := relu(h), a no-op after any real relu'd block).
    w_stack = jnp.stack([w1f, w2f], axis=1)                       # (L, 2, H, H)
    w_stack = _pad_to(_pad_to(_pad_to(w_stack, 2, Hp), 3, Hp), 0, L_pad)
    b_stack = jnp.stack([b1f, b2f], axis=1)[:, :, None, :]        # (L, 2, 1, H)
    b_stack = _pad_to(_pad_to(b_stack, 3, Hp), 0, L_pad)

    w_out_p = _pad_to(_pad_to(p["w_out"], 0, Hp), 1, Op).astype(jnp.bfloat16)
    b_out_p = _pad_to(p["b_out"][None, :], 1, Op)

    return dict(table=table_p, w_in=w_in_p, b_in=b_in_p,
                w_stack=w_stack.astype(jnp.bfloat16),
                b_stack=b_stack.astype(jnp.float32),
                w_out=w_out_p, b_out=b_out_p)


# --------------------------- pure-JAX f32 reference (unfolded BN) ------------

def reference_forward(tokens, p):
    hi = lax.Precision.HIGHEST
    x = p["table"][tokens].mean(axis=1)                            # (B, E)
    x = jnp.dot(x, p["w_in"], precision=hi) + p["b_in"]
    L = p["w1"].shape[0]
    for l in range(L):
        identity = x
        out = jnp.dot(x, p["w1"][l], precision=hi) + p["b1"][l]
        out = ((out - p["mean"][l, 0]) / jnp.sqrt(p["var"][l, 0] + EPS)
               * p["gamma"][l, 0] + p["beta"][l, 0])
        out = jnp.maximum(out, 0.0)
        out = jnp.dot(out, p["w2"][l], precision=hi) + p["b2"][l]
        out = ((out - p["mean"][l, 1]) / jnp.sqrt(p["var"][l, 1] + EPS)
               * p["gamma"][l, 1] + p["beta"][l, 1])
        # Dropout(0.5) eval == identity
        x = jnp.maximum(out + identity, 0.0)
    return jnp.dot(x, p["w_out"], precision=hi) + p["b_out"]


# --------------------------- main --------------------------------------------

if __name__ == "__main__":
    # Small shapes consistent with the module: vocab=64, embed=32, hidden=32,
    # output=16, num_layers=8 (module default 500 reduced for the example),
    # batch=2, seq=8. layers_per_step=4 -> a 2-step layer-streaming grid.
    V, E, H, O, L = 64, 32, 32, 16, 8
    B, S = 2, 8
    LAYERS_PER_STEP = 4   # use ~8 per step for the real L=500 configuration

    key = jax.random.PRNGKey(0)
    k_params, k_tok = jax.random.split(key)
    params = init_params(k_params, V, E, H, O, L)
    kparams = fold_and_pad_params(params, LAYERS_PER_STEP)
    tokens = jax.random.randint(k_tok, (B, S), 0, V, dtype=jnp.int32)

    out = deep_llm_forward(tokens, kparams, O, LAYERS_PER_STEP)
    jax.block_until_ready(out)

    ref = reference_forward(tokens, params)
    assert out.shape == (B, O), out.shape
    # bf16 weights => ~0.2% per-matmul rounding accumulated over 2L+3 matmuls.
    assert jnp.allclose(out, ref, atol=5e-2, rtol=5e-2), (
        f"mismatch: max abs err {jnp.max(jnp.abs(out - ref))}")

    print("KERNEL_OK")
</pallas_src>

<mosaic_0001>
module attributes {stable_mosaic.version = 11 : i64} {
  func.func @deep_llm_kernel(%arg0: i32, %arg1: memref<8x8xi32, #tpu.memory_space<vmem>>, %arg2: memref<128x128xbf16, #tpu.memory_space<vmem>>, %arg3: memref<128x128xbf16, #tpu.memory_space<vmem>>, %arg4: memref<1x128xf32, #tpu.memory_space<vmem>>, %arg5: memref<4x2x128x128xbf16, #tpu.memory_space<vmem>>, %arg6: memref<4x2x1x128xf32, #tpu.memory_space<vmem>>, %arg7: memref<128x128xbf16, #tpu.memory_space<vmem>>, %arg8: memref<1x128xf32, #tpu.memory_space<vmem>>, %arg9: memref<8x128xf32, #tpu.memory_space<vmem>>, %arg10: memref<8x128xf32, #tpu.memory_space<vmem>>) attributes {dimension_semantics = [#tpu.dimension_semantics<arbitrary>], iteration_bounds = array<i64: 2>, scalar_prefetch = 0 : i64, scratch_operands = 1 : i64, tpu.core_type = #tpu.core_type<tc>, window_params = [{pipeline_mode = #tpu.pipeline_mode<synchronous>, transform_indices = @transform_0, window_bounds = array<i64: 8, 8>}, {pipeline_mode = #tpu.pipeline_mode<synchronous>, transform_indices = @transform_1, window_bounds = array<i64: 128, 128>}, {pipeline_mode = #tpu.pipeline_mode<synchronous>, transform_indices = @transform_2, window_bounds = array<i64: 128, 128>}, {pipeline_mode = #tpu.pipeline_mode<synchronous>, transform_indices = @transform_3, window_bounds = array<i64: 1, 128>}, {transform_indices = @transform_4, window_bounds = array<i64: 4, 2, 128, 128>}, {transform_indices = @transform_5, window_bounds = array<i64: 4, 2, 1, 128>}, {pipeline_mode = #tpu.pipeline_mode<synchronous>, transform_indices = @transform_6, window_bounds = array<i64: 128, 128>}, {pipeline_mode = #tpu.pipeline_mode<synchronous>, transform_indices = @transform_7, window_bounds = array<i64: 1, 128>}, {pipeline_mode = #tpu.pipeline_mode<synchronous>, transform_indices = @transform_8, window_bounds = array<i64: 8, 128>}]} {
    %c0_i32 = arith.constant 0 : i32
    %0 = arith.cmpi eq, %arg0, %c0_i32 : i32
    %1 = arith.extui %0 : i1 to i32
    %c0_i32_0 = arith.constant 0 : i32
    %2 = arith.cmpi ne, %1, %c0_i32_0 : i32
    scf.if %2 {
      %c0_81 = arith.constant 0 : index
      %c0_82 = arith.constant 0 : index
      %92 = vector.load %arg1[%c0_81, %c0_82] : memref<8x8xi32, #tpu.memory_space<vmem>>, vector<8x8xi32>
      %93 = tpu.iota {dimensions = array<i32: 1>} : vector<8x128xi32>
      %cst_83 = arith.constant 0.000000e+00 : f32
      %94 = vector.broadcast %cst_83 : f32 to vector<8x128xf32>
      %95 = vector.extract_strided_slice %92 {offsets = [0, 0], sizes = [8, 1], strides = [1, 1]} : vector<8x8xi32> to vector<8x1xi32>
      %96 = vector.broadcast %95 : vector<8x1xi32> to vector<8x128xi32>
      %97 = arith.cmpi eq, %93, %96 : vector<8x128xi32>
      %98 = arith.extui %97 : vector<8x128xi1> to vector<8x128xi32>
      %99 = arith.sitofp %98 : vector<8x128xi32> to vector<8x128xf32>
      %100 = arith.addf %94, %99 : vector<8x128xf32>
      %101 = vector.extract_strided_slice %92 {offsets = [0, 1], sizes = [8, 1], strides = [1, 1]} : vector<8x8xi32> to vector<8x1xi32>
      %102 = vector.broadcast %101 : vector<8x1xi32> to vector<8x128xi32>
      %103 = arith.cmpi eq, %93, %102 : vector<8x128xi32>
      %104 = arith.extui %103 : vector<8x128xi1> to vector<8x128xi32>
      %105 = arith.sitofp %104 : vector<8x128xi32> to vector<8x128xf32>
      %106 = arith.addf %100, %105 : vector<8x128xf32>
      %107 = vector.extract_strided_slice %92 {offsets = [0, 2], sizes = [8, 1], strides = [1, 1]} : vector<8x8xi32> to vector<8x1xi32>
      %108 = vector.broadcast %107 : vector<8x1xi32> to vector<8x128xi32>
      %109 = arith.cmpi eq, %93, %108 : vector<8x128xi32>
      %110 = arith.extui %109 : vector<8x128xi1> to vector<8x128xi32>
      %111 = arith.sitofp %110 : vector<8x128xi32> to vector<8x128xf32>
      %112 = arith.addf %106, %111 : vector<8x128xf32>
      %113 = vector.extract_strided_slice %92 {offsets = [0, 3], sizes = [8, 1], strides = [1, 1]} : vector<8x8xi32> to vector<8x1xi32>
      %114 = vector.broadcast %113 : vector<8x1xi32> to vector<8x128xi32>
      %115 = arith.cmpi eq, %93, %114 : vector<8x128xi32>
      %116 = arith.extui %115 : vector<8x128xi1> to vector<8x128xi32>
      %117 = arith.sitofp %116 : vector<8x128xi32> to vector<8x128xf32>
      %118 = arith.addf %112, %117 : vector<8x128xf32>
      %119 = vector.extract_strided_slice %92 {offsets = [0, 4], sizes = [8, 1], strides = [1, 1]} : vector<8x8xi32> to vector<8x1xi32>
      %120 = vector.broadcast %119 : vector<8x1xi32> to vector<8x128xi32>
      %121 = arith.cmpi eq, %93, %120 : vector<8x128xi32>
      %122 = arith.extui %121 : vector<8x128xi1> to vector<8x128xi32>
      %123 = arith.sitofp %122 : vector<8x128xi32> to vector<8x128xf32>
      %124 = arith.addf %118, %123 : vector<8x128xf32>
      %125 = vector.extract_strided_slice %92 {offsets = [0, 5], sizes = [8, 1], strides = [1, 1]} : vector<8x8xi32> to vector<8x1xi32>
      %126 = vector.broadcast %125 : vector<8x1xi32> to vector<8x128xi32>
      %127 = arith.cmpi eq, %93, %126 : vector<8x128xi32>
      %128 = arith.extui %127 : vector<8x128xi1> to vector<8x128xi32>
      %129 = arith.sitofp %128 : vector<8x128xi32> to vector<8x128xf32>
      %130 = arith.addf %124, %129 : vector<8x128xf32>
      %131 = vector.extract_strided_slice %92 {offsets = [0, 6], sizes = [8, 1], strides = [1, 1]} : vector<8x8xi32> to vector<8x1xi32>
      %132 = vector.broadcast %131 : vector<8x1xi32> to vector<8x128xi32>
      %133 = arith.cmpi eq, %93, %132 : vector<8x128xi32>
      %134 = arith.extui %133 : vector<8x128xi1> to vector<8x128xi32>
      %135 = arith.sitofp %134 : vector<8x128xi32> to vector<8x128xf32>
      %136 = arith.addf %130, %135 : vector<8x128xf32>
      %137 = vector.extract_strided_slice %92 {offsets = [0, 7], sizes = [8, 1], strides = [1, 1]} : vector<8x8xi32> to vector<8x1xi32>
      %138 = vector.broadcast %137 : vector<8x1xi32> to vector<8x128xi32>
      %139 = arith.cmpi eq, %93, %138 : vector<8x128xi32>
      %140 = arith.extui %139 : vector<8x128xi1> to vector<8x128xi32>
      %141 = arith.sitofp %140 : vector<8x128xi32> to vector<8x128xf32>
      %142 = arith.addf %136, %141 : vector<8x128xf32>
      %cst_84 = arith.constant 1.250000e-01 : f32
      %143 = vector.broadcast %cst_84 : f32 to vector<8x128xf32>
      %144 = arith.mulf %142, %143 : vector<8x128xf32>
      %145 = arith.truncf %144 : vector<8x128xf32> to vector<8x128xbf16>
      %c0_85 = arith.constant 0 : index
      %c0_86 = arith.constant 0 : index
      %146 = vector.load %arg2[%c0_85, %c0_86] : memref<128x128xbf16, #tpu.memory_space<vmem>>, vector<128x128xbf16>
      %cst_87 = arith.constant dense<0.000000e+00> : vector<8x128xf32>
      %147 = tpu.matmul %145, %146, %cst_87 {dimension_numbers = #tpu.dot_dimension_numbers<[1], [0], [0], [1], [0, 0, 1, 1], [], []>} : vector<8x128xbf16>, vector<128x128xbf16>, vector<8x128xf32> -> vector<8x128xf32>
      %148 = arith.truncf %147 : vector<8x128xf32> to vector<8x128xbf16>
      %c0_88 = arith.constant 0 : index
      %c0_89 = arith.constant 0 : index
      %149 = vector.load %arg3[%c0_88, %c0_89] : memref<128x128xbf16, #tpu.memory_space<vmem>>, vector<128x128xbf16>
      %cst_90 = arith.constant dense<0.000000e+00> : vector<8x128xf32>
      %150 = tpu.matmul %148, %149, %cst_90 {dimension_numbers = #tpu.dot_dimension_numbers<[1], [0], [0], [1], [0, 0, 1, 1], [], []>} : vector<8x128xbf16>, vector<128x128xbf16>, vector<8x128xf32> -> vector<8x128xf32>
      %c0_91 = arith.constant 0 : index
      %c0_92 = arith.constant 0 : index
      %151 = vector.load %arg4[%c0_91, %c0_92] : memref<1x128xf32, #tpu.memory_space<vmem>>, vector<1x128xf32>
      %152 = vector.broadcast %151 : vector<1x128xf32> to vector<8x128xf32>
      %153 = arith.addf %150, %152 : vector<8x128xf32>
      %c0_93 = arith.constant 0 : index
      %c0_94 = arith.constant 0 : index
      %154 = vector.load %arg10[%c0_93, %c0_94] : memref<8x128xf32, #tpu.memory_space<vmem>>, vector<8x128xf32>
      tpu.vector_store %arg10[%c0_93, %c0_94], %153 {strides = array<i32>} : memref<8x128xf32, #tpu.memory_space<vmem>>, vector<8x128xf32>,
    } else {
    }
    %c0 = arith.constant 0 : index
    %c0_1 = arith.constant 0 : index
    %3 = vector.load %arg10[%c0, %c0_1] : memref<8x128xf32, #tpu.memory_space<vmem>>, vector<8x128xf32>
    %4 = arith.truncf %3 : vector<8x128xf32> to vector<8x128xbf16>
    %c0_2 = arith.constant 0 : index
    %c0_3 = arith.constant 0 : index
    %c0_4 = arith.constant 0 : index
    %c0_5 = arith.constant 0 : index
    %5 = vector.load %arg5[%c0_2, %c0_3, %c0_4, %c0_5] : memref<4x2x128x128xbf16, #tpu.memory_space<vmem>>, vector<1x1x128x128xbf16>
    %6 = vector.shape_cast %5 : vector<1x1x128x128xbf16> to vector<128x128xbf16>
    %cst = arith.constant dense<0.000000e+00> : vector<8x128xf32>
    %7 = tpu.matmul %4, %6, %cst {dimension_numbers = #tpu.dot_dimension_numbers<[1], [0], [0], [1], [0, 0, 1, 1], [], []>} : vector<8x128xbf16>, vector<128x128xbf16>, vector<8x128xf32> -> vector<8x128xf32>
    %c0_6 = arith.constant 0 : index
    %c0_7 = arith.constant 0 : index
    %c0_8 = arith.constant 0 : index
    %c0_9 = arith.constant 0 : index
    %8 = vector.load %arg6[%c0_6, %c0_7, %c0_8, %c0_9] : memref<4x2x1x128xf32, #tpu.memory_space<vmem>>, vector<1x1x1x128xf32>
    %9 = vector.shape_cast %8 : vector<1x1x1x128xf32> to vector<1x128xf32>
    %10 = vector.broadcast %9 : vector<1x128xf32> to vector<8x128xf32>
    %11 = arith.addf %7, %10 : vector<8x128xf32>
    %cst_10 = arith.constant 0.000000e+00 : f32
    %12 = vector.broadcast %cst_10 : f32 to vector<8x128xf32>
    %13 = arith.maximumf %11, %12 : vector<8x128xf32>
    %14 = arith.truncf %13 : vector<8x128xf32> to vector<8x128xbf16>
    %c0_11 = arith.constant 0 : index
    %c1 = arith.constant 1 : index
    %c0_12 = arith.constant 0 : index
    %c0_13 = arith.constant 0 : index
    %15 = vector.load %arg5[%c0_11, %c1, %c0_12, %c0_13] : memref<4x2x128x128xbf16, #tpu.memory_space<vmem>>, vector<1x1x128x128xbf16>
    %16 = vector.shape_cast %15 : vector<1x1x128x128xbf16> to vector<128x128xbf16>
    %cst_14 = arith.constant dense<0.000000e+00> : vector<8x128xf32>
    %17 = tpu.matmul %14, %16, %cst_14 {dimension_numbers = #tpu.dot_dimension_numbers<[1], [0], [0], [1], [0, 0, 1, 1], [], []>} : vector<8x128xbf16>, vector<128x128xbf16>, vector<8x128xf32> -> vector<8x128xf32>
    %c0_15 = arith.constant 0 : index
    %c1_16 = arith.constant 1 : index
    %c0_17 = arith.constant 0 : index
    %c0_18 = arith.constant 0 : index
    %18 = vector.load %arg6[%c0_15, %c1_16, %c0_17, %c0_18] : memref<4x2x1x128xf32, #tpu.memory_space<vmem>>, vector<1x1x1x128xf32>
    %19 = vector.shape_cast %18 : vector<1x1x1x128xf32> to vector<1x128xf32>
    %20 = vector.broadcast %19 : vector<1x128xf32> to vector<8x128xf32>
    %21 = arith.addf %17, %20 : vector<8x128xf32>
    %22 = arith.addf %21, %3 : vector<8x128xf32>
    %cst_19 = arith.constant 0.000000e+00 : f32
    %23 = vector.broadcast %cst_19 : f32 to vector<8x128xf32>
    %24 = arith.maximumf %22, %23 : vector<8x128xf32>
    %25 = arith.truncf %24 : vector<8x128xf32> to vector<8x128xbf16>
    %c1_20 = arith.constant 1 : index
    %c0_21 = arith.constant 0 : index
    %c0_22 = arith.constant 0 : index
    %c0_23 = arith.constant 0 : index
    %26 = vector.load %arg5[%c1_20, %c0_21, %c0_22, %c0_23] : memref<4x2x128x128xbf16, #tpu.memory_space<vmem>>, vector<1x1x128x128xbf16>
    %27 = vector.shape_cast %26 : vector<1x1x128x128xbf16> to vector<128x128xbf16>
    %cst_24 = arith.constant dense<0.000000e+00> : vector<8x128xf32>
    %28 = tpu.matmul %25, %27, %cst_24 {dimension_numbers = #tpu.dot_dimension_numbers<[1], [0], [0], [1], [0, 0, 1, 1], [], []>} : vector<8x128xbf16>, vector<128x128xbf16>, vector<8x128xf32> -> vector<8x128xf32>
    %c1_25 = arith.constant 1 : index
    %c0_26 = arith.constant 0 : index
    %c0_27 = arith.constant 0 : index
    %c0_28 = arith.constant 0 : index
    %29 = vector.load %arg6[%c1_25, %c0_26, %c0_27, %c0_28] : memref<4x2x1x128xf32, #tpu.memory_space<vmem>>, vector<1x1x1x128xf32>
    %30 = vector.shape_cast %29 : vector<1x1x1x128xf32> to vector<1x128xf32>
    %31 = vector.broadcast %30 : vector<1x128xf32> to vector<8x128xf32>
    %32 = arith.addf %28, %31 : vector<8x128xf32>
    %cst_29 = arith.constant 0.000000e+00 : f32
    %33 = vector.broadcast %cst_29 : f32 to vector<8x128xf32>
    %34 = arith.maximumf %32, %33 : vector<8x128xf32>
    %35 = arith.truncf %34 : vector<8x128xf32> to vector<8x128xbf16>
    %c1_30 = arith.constant 1 : index
    %c1_31 = arith.constant 1 : index
    %c0_32 = arith.constant 0 : index
    %c0_33 = arith.constant 0 : index
    %36 = vector.load %arg5[%c1_30, %c1_31, %c0_32, %c0_33] : memref<4x2x128x128xbf16, #tpu.memory_space<vmem>>, vector<1x1x128x128xbf16>
    %37 = vector.shape_cast %36 : vector<1x1x128x128xbf16> to vector<128x128xbf16>
    %cst_34 = arith.constant dense<0.000000e+00> : vector<8x128xf32>
    %38 = tpu.matmul %35, %37, %cst_34 {dimension_numbers = #tpu.dot_dimension_numbers<[1], [0], [0], [1], [0, 0, 1, 1], [], []>} : vector<8x128xbf16>, vector<128x128xbf16>, vector<8x128xf32> -> vector<8x128xf32>
    %c1_35 = arith.constant 1 : index
    %c1_36 = arith.constant 1 : index
    %c0_37 = arith.constant 0 : index
    %c0_38 = arith.constant 0 : index
    %39 = vector.load %arg6[%c1_35, %c1_36, %c0_37, %c0_38] : memref<4x2x1x128xf32, #tpu.memory_space<vmem>>, vector<1x1x1x128xf32>
    %40 = vector.shape_cast %39 : vector<1x1x1x128xf32> to vector<1x128xf32>
    %41 = vector.broadcast %40 : vector<1x128xf32> to vector<8x128xf32>
    %42 = arith.addf %38, %41 : vector<8x128xf32>
    %43 = arith.addf %42, %24 : vector<8x128xf32>
    %cst_39 = arith.constant 0.000000e+00 : f32
    %44 = vector.broadcast %cst_39 : f32 to vector<8x128xf32>
    %45 = arith.maximumf %43, %44 : vector<8x128xf32>
    %46 = arith.truncf %45 : vector<8x128xf32> to vector<8x128xbf16>
    %c2 = arith.constant 2 : index
    %c0_40 = arith.constant 0 : index
    %c0_41 = arith.constant 0 : index
    %c0_42 = arith.constant 0 : index
    %47 = vector.load %arg5[%c2, %c0_40, %c0_41, %c0_42] : memref<4x2x128x128xbf16, #tpu.memory_space<vmem>>, vector<1x1x128x128xbf16>
    %48 = vector.shape_cast %47 : vector<1x1x128x128xbf16> to vector<128x128xbf16>
    %cst_43 = arith.constant dense<0.000000e+00> : vector<8x128xf32>
    %49 = tpu.matmul %46, %48, %cst_43 {dimension_numbers = #tpu.dot_dimension_numbers<[1], [0], [0], [1], [0, 0, 1, 1], [], []>} : vector<8x128xbf16>, vector<128x128xbf16>, vector<8x128xf32> -> vector<8x128xf32>
    %c2_44 = arith.constant 2 : index
    %c0_45 = arith.constant 0 : index
    %c0_46 = arith.constant 0 : index
    %c0_47 = arith.constant 0 : index
    %50 = vector.load %arg6[%c2_44, %c0_45, %c0_46, %c0_47] : memref<4x2x1x128xf32, #tpu.memory_space<vmem>>, vector<1x1x1x128xf32>
    %51 = vector.shape_cast %50 : vector<1x1x1x128xf32> to vector<1x128xf32>
    %52 = vector.broadcast %51 : vector<1x128xf32> to vector<8x128xf32>
    %53 = arith.addf %49, %52 : vector<8x128xf32>
    %cst_48 = arith.constant 0.000000e+00 : f32
    %54 = vector.broadcast %cst_48 : f32 to vector<8x128xf32>
    %55 = arith.maximumf %53, %54 : vector<8x128xf32>
    %56 = arith.truncf %55 : vector<8x128xf32> to vector<8x128xbf16>
    %c2_49 = arith.constant 2 : index
    %c1_50 = arith.constant 1 : index
    %c0_51 = arith.constant 0 : index
    %c0_52 = arith.constant 0 : index
    %57 = vector.load %arg5[%c2_49, %c1_50, %c0_51, %c0_52] : memref<4x2x128x128xbf16, #tpu.memory_space<vmem>>, vector<1x1x128x128xbf16>
    %58 = vector.shape_cast %57 : vector<1x1x128x128xbf16> to vector<128x128xbf16>
    %cst_53 = arith.constant dense<0.000000e+00> : vector<8x128xf32>
    %59 = tpu.matmul %56, %58, %cst_53 {dimension_numbers = #tpu.dot_dimension_numbers<[1], [0], [0], [1], [0, 0, 1, 1], [], []>} : vector<8x128xbf16>, vector<128x128xbf16>, vector<8x128xf32> -> vector<8x128xf32>
    %c2_54 = arith.constant 2 : index
    %c1_55 = arith.constant 1 : index
    %c0_56 = arith.constant 0 : index
    %c0_57 = arith.constant 0 : index
    %60 = vector.load %arg6[%c2_54, %c1_55, %c0_56, %c0_57] : memref<4x2x1x128xf32, #tpu.memory_space<vmem>>, vector<1x1x1x128xf32>
    %61 = vector.shape_cast %60 : vector<1x1x1x128xf32> to vector<1x128xf32>
    %62 = vector.broadcast %61 : vector<1x128xf32> to vector<8x128xf32>
    %63 = arith.addf %59, %62 : vector<8x128xf32>
    %64 = arith.addf %63, %45 : vector<8x128xf32>
    %cst_58 = arith.constant 0.000000e+00 : f32
    %65 = vector.broadcast %cst_58 : f32 to vector<8x128xf32>
    %66 = arith.maximumf %64, %65 : vector<8x128xf32>
    %67 = arith.truncf %66 : vector<8x128xf32> to vector<8x128xbf16>
    %c3 = arith.constant 3 : index
    %c0_59 = arith.constant 0 : index
    %c0_60 = arith.constant 0 : index
    %c0_61 = arith.constant 0 : index
    %68 = vector.load %arg5[%c3, %c0_59, %c0_60, %c0_61] : memref<4x2x128x128xbf16, #tpu.memory_space<vmem>>, vector<1x1x128x128xbf16>
    %69 = vector.shape_cast %68 : vector<1x1x128x128xbf16> to vector<128x128xbf16>
    %cst_62 = arith.constant dense<0.000000e+00> : vector<8x128xf32>
    %70 = tpu.matmul %67, %69, %cst_62 {dimension_numbers = #tpu.dot_dimension_numbers<[1], [0], [0], [1], [0, 0, 1, 1], [], []>} : vector<8x128xbf16>, vector<128x128xbf16>, vector<8x128xf32> -> vector<8x128xf32>
    %c3_63 = arith.constant 3 : index
    %c0_64 = arith.constant 0 : index
    %c0_65 = arith.constant 0 : index
    %c0_66 = arith.constant 0 : index
    %71 = vector.load %arg6[%c3_63, %c0_64, %c0_65, %c0_66] : memref<4x2x1x128xf32, #tpu.memory_space<vmem>>, vector<1x1x1x128xf32>
    %72 = vector.shape_cast %71 : vector<1x1x1x128xf32> to vector<1x128xf32>
    %73 = vector.broadcast %72 : vector<1x128xf32> to vector<8x128xf32>
    %74 = arith.addf %70, %73 : vector<8x128xf32>
    %cst_67 = arith.constant 0.000000e+00 : f32
    %75 = vector.broadcast %cst_67 : f32 to vector<8x128xf32>
    %76 = arith.maximumf %74, %75 : vector<8x128xf32>
    %77 = arith.truncf %76 : vector<8x128xf32> to vector<8x128xbf16>
    %c3_68 = arith.constant 3 : index
    %c1_69 = arith.constant 1 : index
    %c0_70 = arith.constant 0 : index
    %c0_71 = arith.constant 0 : index
    %78 = vector.load %arg5[%c3_68, %c1_69, %c0_70, %c0_71] : memref<4x2x128x128xbf16, #tpu.memory_space<vmem>>, vector<1x1x128x128xbf16>
    %79 = vector.shape_cast %78 : vector<1x1x128x128xbf16> to vector<128x128xbf16>
    %cst_72 = arith.constant dense<0.000000e+00> : vector<8x128xf32>
    %80 = tpu.matmul %77, %79, %cst_72 {dimension_numbers = #tpu.dot_dimension_numbers<[1], [0], [0], [1], [0, 0, 1, 1], [], []>} : vector<8x128xbf16>, vector<128x128xbf16>, vector<8x128xf32> -> vector<8x128xf32>
    %c3_73 = arith.constant 3 : index
    %c1_74 = arith.constant 1 : index
    %c0_75 = arith.constant 0 : index
    %c0_76 = arith.constant 0 : index
    %81 = vector.load %arg6[%c3_73, %c1_74, %c0_75, %c0_76] : memref<4x2x1x128xf32, #tpu.memory_space<vmem>>, vector<1x1x1x128xf32>
    %82 = vector.shape_cast %81 : vector<1x1x1x128xf32> to vector<1x128xf32>
    %83 = vector.broadcast %82 : vector<1x128xf32> to vector<8x128xf32>
    %84 = arith.addf %80, %83 : vector<8x128xf32>
    %85 = arith.addf %84, %66 : vector<8x128xf32>
    %cst_77 = arith.constant 0.000000e+00 : f32
    %86 = vector.broadcast %cst_77 : f32 to vector<8x128xf32>
    %87 = arith.maximumf %85, %86 : vector<8x128xf32>
    %c0_78 = arith.constant 0 : index
    %c0_79 = arith.constant 0 : index
    %88 = vector.load %arg10[%c0_78, %c0_79] : memref<8x128xf32, #tpu.memory_space<vmem>>, vector<8x128xf32>
    tpu.vector_store %arg10[%c0_78, %c0_79], %87 {strides = array<i32>} : memref<8x128xf32, #tpu.memory_space<vmem>>, vector<8x128xf32>,
    %c1_i32 = arith.constant 1 : i32
    %89 = arith.cmpi eq, %arg0, %c1_i32 : i32
    %90 = arith.extui %89 : i1 to i32
    %c0_i32_80 = arith.constant 0 : i32
    %91 = arith.cmpi ne, %90, %c0_i32_80 : i32
    scf.if %91 {
      %92 = arith.truncf %87 : vector<8x128xf32> to vector<8x128xbf16>
      %c0_81 = arith.constant 0 : index
      %c0_82 = arith.constant 0 : index
      %93 = vector.load %arg7[%c0_81, %c0_82] : memref<128x128xbf16, #tpu.memory_space<vmem>>, vector<128x128xbf16>
      %cst_83 = arith.constant dense<0.000000e+00> : vector<8x128xf32>
      %94 = tpu.matmul %92, %93, %cst_83 {dimension_numbers = #tpu.dot_dimension_numbers<[1], [0], [0], [1], [0, 0, 1, 1], [], []>} : vector<8x128xbf16>, vector<128x128xbf16>, vector<8x128xf32> -> vector<8x128xf32>
      %c0_84 = arith.constant 0 : index
      %c0_85 = arith.constant 0 : index
      %95 = vector.load %arg8[%c0_84, %c0_85] : memref<1x128xf32, #tpu.memory_space<vmem>>, vector<1x128xf32>
      %96 = vector.broadcast %95 : vector<1x128xf32> to vector<8x128xf32>
      %97 = arith.addf %94, %96 : vector<8x128xf32>
      %c0_86 = arith.constant 0 : index
      %c0_87 = arith.constant 0 : index
      %98 = vector.load %arg9[%c0_86, %c0_87] : memref<8x128xf32, #tpu.memory_space<vmem>>, vector<8x128xf32>
      tpu.vector_store %arg9[%c0_86, %c0_87], %97 {strides = array<i32>} : memref<8x128xf32, #tpu.memory_space<vmem>>, vector<8x128xf32>,
    } else {
    }
    return
  }
  func.func @transform_0(%arg0: i32) -> (i32, i32) {
    %c0_i32 = arith.constant 0 : i32
    %c0_i32_0 = arith.constant 0 : i32
    %c0_i32_1 = arith.constant 0 : i32
    return %c0_i32, %c0_i32_0 : i32, i32
  }
  func.func @transform_1(%arg0: i32) -> (i32, i32) {
    %c0_i32 = arith.constant 0 : i32
    %c0_i32_0 = arith.constant 0 : i32
    %c0_i32_1 = arith.constant 0 : i32
    return %c0_i32, %c0_i32_0 : i32, i32
  }
  func.func @transform_2(%arg0: i32) -> (i32, i32) {
    %c0_i32 = arith.constant 0 : i32
    %c0_i32_0 = arith.constant 0 : i32
    %c0_i32_1 = arith.constant 0 : i32
    return %c0_i32, %c0_i32_0 : i32, i32
  }
  func.func @transform_3(%arg0: i32) -> (i32, i32) {
    %c0_i32 = arith.constant 0 : i32
    %c0_i32_0 = arith.constant 0 : i32
    %c0_i32_1 = arith.constant 0 : i32
    return %c0_i32, %c0_i32_0 : i32, i32
  }
  func.func @transform_4(%arg0: i32) -> (i32, i32, i32, i32) {
    %c0_i32 = arith.constant 0 : i32
    %c0_i32_0 = arith.constant 0 : i32
    %c0_i32_1 = arith.constant 0 : i32
    %c0_i32_2 = arith.constant 0 : i32
    return %arg0, %c0_i32, %c0_i32_0, %c0_i32_1 : i32, i32, i32, i32
  }
  func.func @transform_5(%arg0: i32) -> (i32, i32, i32, i32) {
    %c0_i32 = arith.constant 0 : i32
    %c0_i32_0 = arith.constant 0 : i32
    %c0_i32_1 = arith.constant 0 : i32
    %c0_i32_2 = arith.constant 0 : i32
    return %arg0, %c0_i32, %c0_i32_0, %c0_i32_1 : i32, i32, i32, i32
  }
  func.func @transform_6(%arg0: i32) -> (i32, i32) {
    %c0_i32 = arith.constant 0 : i32
    %c0_i32_0 = arith.constant 0 : i32
    %c0_i32_1 = arith.constant 0 : i32
    return %c0_i32, %c0_i32_0 : i32, i32
  }
  func.func @transform_7(%arg0: i32) -> (i32, i32) {
    %c0_i32 = arith.constant 0 : i32
    %c0_i32_0 = arith.constant 0 : i32
    %c0_i32_1 = arith.constant 0 : i32
    return %c0_i32, %c0_i32_0 : i32, i32
  }
  func.func @transform_8(%arg0: i32) -> (i32, i32) {
    %c0_i32 = arith.constant 0 : i32
    %c0_i32_0 = arith.constant 0 : i32
    %c0_i32_1 = arith.constant 0 : i32
    return %c0_i32, %c0_i32_0 : i32, i32
  }
}

</mosaic_0001>

<llo_original>
// kernel: deep_llm_forward.1
$region0: #{deep_llm_forward.1}
  #allocation0 [shape = 'u32[]', space=smem, size = 0x4, offset = 0x4, fixed_abs, tag = 'smem constant byte address 0x4 - core index']
  #allocation1 [shape = 'u32[72,128]{1,0:T(1,128)}', space=vmem, size = 0x9000, scoped, tag = 'internal scratch']
  #allocation2 [shape = 'f32[8,128]{1,0:T(8,128)}', space=vmem, size = 0x1000, scoped, tag = 'scratch operand']
  %s0 = inlined_call_operand.vmem [shape: s32[8,8], index: 0, kind: input, shape index: {}]
  %s1 = inlined_call_operand.hbm [shape: bf16[128,128], index: 1, kind: input, shape index: {}]
  %s2 = inlined_call_operand.hbm [shape: bf16[128,128], index: 2, kind: input, shape index: {}]
  %s3 = inlined_call_operand.vmem [shape: f32[1,128], index: 3, kind: input, shape index: {}]
  %s4 = inlined_call_operand.hbm [shape: bf16[8,2,128,128], index: 4, kind: input, shape index: {}]
  %s5 = inlined_call_operand.hbm [shape: f32[8,2,1,128], index: 5, kind: input, shape index: {}]
  %s6 = inlined_call_operand.hbm [shape: bf16[128,128], index: 6, kind: input, shape index: {}]
  %s7 = inlined_call_operand.vmem [shape: f32[1,128], index: 7, kind: input, shape index: {}]
  %s8 = inlined_call_operand.vmem [shape: f32[8,128], index: 8, kind: output, shape index: {}]
  %s9 = sld [smem:[#allocation0]]
  $region93: #{deep_llm_forward.1} parent=0
    _
  %s11 = ssub.s32 1, %s9
  %s12 = scalar_select 0, %s11, %s9
  $region1: #{deep_llm_forward.1} parent=0
    #allocation3 [shape = 'u8[32768]{0}', space=vmem, size = 0x8000, scoped, tag = 'input window, operand 1, single buffered']
    #allocation4 [shape = 's32[2]{0}', space=sflag, size = 0x8, scoped, tag = 'scoped memory for deep_llm_forward.1']
    #allocation5 [shape = 'u8[32768]{0}', space=vmem, size = 0x8000, scoped, tag = 'input window, operand 2, single buffered']
    #allocation6 [shape = 's32[1]{0}', space=sflag, size = 0x4, scoped, tag = 'scoped memory for deep_llm_forward.1']
    #allocation7 [shape = 'u8[524288]{0}', space=vmem, size = 0x80000, scoped, tag = 'input window, operand 4']
    #allocation8 [shape = 'u8[8192]{0}', space=vmem, size = 0x2000, scoped, tag = 'input window, operand 5']
    #allocation9 [shape = 'u8[32768]{0}', space=vmem, size = 0x8000, scoped, tag = 'input window, operand 6, single buffered']
    %13 = vsyncpa [#allocation4], 0
    %14 = vsyncpa [#allocation6], 0
    loop: start=0, step=1, limit=4
    $region2: #{deep_llm_forward.1} parent=1 // loop_pre_header
      _
    $region3: #{deep_llm_forward.1} parent=1 // loop_header
      %s16 = sphi 0, %s20
      %p17 = scmp.ge.s32.totalorder %s16, 4
      %s24 = sphi 0, %s24
      %s26 = sphi 0, %s24
      %s27 = sphi 0, %s26
      %s41 = sphi 0, %s27
      %s45 = sphi 0, %s45
      %s47 = sphi 0, %s45
      %s48 = sphi 0, %s47
      %s62 = sphi 0, %s48
      %s66 = sphi 0, %s66
      %s68 = sphi 0, %s66
      %s69 = sphi 0, %s68
      %s83 = sphi 0, %s69
      %s87 = sphi 0, %s87
      %s89 = sphi 0, %s87
      %s90 = sphi 0, %s89
      %s104 = sphi 0, %s90
      %s110 = sphi 0, %s112
      %s113 = sphi 0, %s110
      %s114 = sphi 0, %s113
      %s130 = sphi 0, %s114
      %s136 = sphi 0, %s138
      %s139 = sphi 0, %s136
      %s140 = sphi 0, %s139
      %s156 = sphi 0, %s140
      %s160 = sphi 0, %s160
      %s162 = sphi 0, %s160
      %s163 = sphi 0, %s162
      %s177 = sphi 0, %s163
      %s181 = sphi 0, %s181
      %s183 = sphi 0, %s181
      %s184 = sphi 0, %s183
      %s198 = sphi 0, %s184
      %s202 = sphi 0, %s202
      %s204 = sphi 0, %s202
      %s205 = sphi 0, %s204
      %s219 = sphi 0, %s205
    $region4: #{deep_llm_forward.1} parent=1 // loop_header_branch
      %19 = sbr.rel (%p17) target = $region8
    $region5: #{deep_llm_forward.1} parent=1 // loop_body
      %s21 = ssub.s32 %s16, 1
      %s22 = ssub.s32 %s16, 2
      %s23 = sadd.s32 %s16, 1
      %s25 = sadd.s32 %s24, 1
      %p28 = scmp.eq.s32.totalorder %s16, 1
      %p29 = scmp.ne.s32.totalorder %s24, %s26
      %p30 = scmp.eq.s32.totalorder %s16, 0
      %p31 = por %p29, %p30
      %p32 = scmp.ne.s32.totalorder %s24, %s26
      %p33 = scmp.eq.s32.totalorder %s21, 1
      %p34 = por %p32, %p33
      %p35 = scmp.ne.s32.totalorder %s26, %s27
      %p36 = scmp.eq.s32.totalorder %s21, 0
      %p37 = por %p35, %p36
      %p38 = scmp.ne.s32.totalorder %s26, %s27
      %p39 = scmp.eq.s32.totalorder %s22, 1
      %p40 = por %p38, %p39
      %p42 = scmp.ne.s32.totalorder %s27, %s41
      %p43 = scmp.eq.s32.totalorder %s22, 0
      %p44 = por %p42, %p43
      %s46 = sadd.s32 %s45, 1
      %p49 = scmp.eq.s32.totalorder %s16, 1
      %p50 = scmp.ne.s32.totalorder %s45, %s47
      %p51 = scmp.eq.s32.totalorder %s16, 0
      %p52 = por %p50, %p51
      %p53 = scmp.ne.s32.totalorder %s45, %s47
      %p54 = scmp.eq.s32.totalorder %s21, 1
      %p55 = por %p53, %p54
      %p56 = scmp.ne.s32.totalorder %s47, %s48
      %p57 = scmp.eq.s32.totalorder %s21, 0
      %p58 = por %p56, %p57
      %p59 = scmp.ne.s32.totalorder %s47, %s48
      %p60 = scmp.eq.s32.totalorder %s22, 1
      %p61 = por %p59, %p60
      %p63 = scmp.ne.s32.totalorder %s48, %s62
      %p64 = scmp.eq.s32.totalorder %s22, 0
      %p65 = por %p63, %p64
      %s67 = sadd.s32 %s66, 1
      %p70 = scmp.eq.s32.totalorder %s16, 1
      %p71 = scmp.ne.s32.totalorder %s66, %s68
      %p72 = scmp.eq.s32.totalorder %s16, 0
      %p73 = por %p71, %p72
      %p74 = scmp.ne.s32.totalorder %s66, %s68
      %p75 = scmp.eq.s32.totalorder %s21, 1
      %p76 = por %p74, %p75
      %p77 = scmp.ne.s32.totalorder %s68, %s69
      %p78 = scmp.eq.s32.totalorder %s21, 0
      %p79 = por %p77, %p78
      %p80 = scmp.ne.s32.totalorder %s68, %s69
      %p81 = scmp.eq.s32.totalorder %s22, 1
      %p82 = por %p80, %p81
      %p84 = scmp.ne.s32.totalorder %s69, %s83
      %p85 = scmp.eq.s32.totalorder %s22, 0
      %p86 = por %p84, %p85
      %s88 = sadd.s32 %s87, 1
      %p91 = scmp.eq.s32.totalorder %s16, 1
      %p92 = scmp.ne.s32.totalorder %s87, %s89
      %p93 = scmp.eq.s32.totalorder %s16, 0
      %p94 = por %p92, %p93
      %p95 = scmp.ne.s32.totalorder %s87, %s89
      %p96 = scmp.eq.s32.totalorder %s21, 1
      %p97 = por %p95, %p96
      %p98 = scmp.ne.s32.totalorder %s89, %s90
      %p99 = scmp.eq.s32.totalorder %s21, 0
      %p100 = por %p98, %p99
      %p101 = scmp.ne.s32.totalorder %s89, %s90
      %p102 = scmp.eq.s32.totalorder %s22, 1
      %p103 = por %p101, %p102
      %p105 = scmp.ne.s32.totalorder %s90, %s104
      %p106 = scmp.eq.s32.totalorder %s22, 0
      %p107 = por %p105, %p106
      %s108 = ssub.s32 %s16, %s23
      %p109 = scmp.eq.s32.totalorder %s108, 0
      %s111 = sadd.s32 %s110, 1
      %s112 = scalar_select %p109, %s110, %s111
      %p115 = pneg %p109
      %p116 = scmp.eq.s32.totalorder %s16, 1
      %p117 = por %p115, %p116
      %p118 = scmp.ne.s32.totalorder %s110, %s113
      %p119 = scmp.eq.s32.totalorder %s16, 0
      %p120 = por %p118, %p119
      %p121 = scmp.ne.s32.totalorder %s110, %s113
      %p122 = scmp.eq.s32.totalorder %s21, 1
      %p123 = por %p121, %p122
      %p124 = scmp.ne.s32.totalorder %s113, %s114
      %p125 = scmp.eq.s32.totalorder %s21, 0
      %p126 = por %p124, %p125
      %p127 = scmp.ne.s32.totalorder %s113, %s114
      %p128 = scmp.eq.s32.totalorder %s22, 1
      %p129 = por %p127, %p128
      %p131 = scmp.ne.s32.totalorder %s114, %s130
      %p132 = scmp.eq.s32.totalorder %s22, 0
      %p133 = por %p131, %p132
      %s134 = ssub.s32 %s16, %s23
      %p135 = scmp.eq.s32.totalorder %s134, 0
      %s137 = sadd.s32 %s136, 1
      %s138 = scalar_select %p135, %s136, %s137
      %p141 = pneg %p135
      %p142 = scmp.eq.s32.totalorder %s16, 1
      %p143 = por %p141, %p142
      %p144 = scmp.ne.s32.totalorder %s136, %s139
      %p145 = scmp.eq.s32.totalorder %s16, 0
      %p146 = por %p144, %p145
      %p147 = scmp.ne.s32.totalorder %s136, %s139
      %p148 = scmp.eq.s32.totalorder %s21, 1
      %p149 = por %p147, %p148
      %p150 = scmp.ne.s32.totalorder %s139, %s140
      %p151 = scmp.eq.s32.totalorder %s21, 0
      %p152 = por %p150, %p151
      %p153 = scmp.ne.s32.totalorder %s139, %s140
      %p154 = scmp.eq.s32.totalorder %s22, 1
      %p155 = por %p153, %p154
      %p157 = scmp.ne.s32.totalorder %s140, %s156
      %p158 = scmp.eq.s32.totalorder %s22, 0
      %p159 = por %p157, %p158
      %s161 = sadd.s32 %s160, 1
      %p164 = scmp.eq.s32.totalorder %s16, 1
      %p165 = scmp.ne.s32.totalorder %s160, %s162
      %p166 = scmp.eq.s32.totalorder %s16, 0
      %p167 = por %p165, %p166
      %p168 = scmp.ne.s32.totalorder %s160, %s162
      %p169 = scmp.eq.s32.totalorder %s21, 1
      %p170 = por %p168, %p169
      %p171 = scmp.ne.s32.totalorder %s162, %s163
      %p172 = scmp.eq.s32.totalorder %s21, 0
      %p173 = por %p171, %p172
      %p174 = scmp.ne.s32.totalorder %s162, %s163
      %p175 = scmp.eq.s32.totalorder %s22, 1
      %p176 = por %p174, %p175
      %p178 = scmp.ne.s32.totalorder %s163, %s177
      %p179 = scmp.eq.s32.totalorder %s22, 0
      %p180 = por %p178, %p179
      %s182 = sadd.s32 %s181, 1
      %p185 = scmp.eq.s32.totalorder %s16, 1
      %p186 = scmp.ne.s32.totalorder %s181, %s183
      %p187 = scmp.eq.s32.totalorder %s16, 0
      %p188 = por %p186, %p187
      %p189 = scmp.ne.s32.totalorder %s181, %s183
      %p190 = scmp.eq.s32.totalorder %s21, 1
      %p191 = por %p189, %p190
      %p192 = scmp.ne.s32.totalorder %s183, %s184
      %p193 = scmp.eq.s32.totalorder %s21, 0
      %p194 = por %p192, %p193
      %p195 = scmp.ne.s32.totalorder %s183, %s184
      %p196 = scmp.eq.s32.totalorder %s22, 1
      %p197 = por %p195, %p196
      %p199 = scmp.ne.s32.totalorder %s184, %s198
      %p200 = scmp.eq.s32.totalorder %s22, 0
      %p201 = por %p199, %p200
      %s203 = sadd.s32 %s202, 1
      %p206 = scmp.eq.s32.totalorder %s16, 1
      %p207 = scmp.ne.s32.totalorder %s202, %s204
      %p208 = scmp.eq.s32.totalorder %s16, 0
      %p209 = por %p207, %p208
      %p210 = scmp.ne.s32.totalorder %s202, %s204
      %p211 = scmp.eq.s32.totalorder %s21, 1
      %p212 = por %p210, %p211
      %p213 = scmp.ne.s32.totalorder %s204, %s205
      %p214 = scmp.eq.s32.totalorder %s21, 0
      %p215 = por %p213, %p214
      %p216 = scmp.ne.s32.totalorder %s204, %s205
      %p217 = scmp.eq.s32.totalorder %s22, 1
      %p218 = por %p216, %p217
      %p220 = scmp.ne.s32.totalorder %s205, %s219
      %p221 = scmp.eq.s32.totalorder %s22, 0
      %p222 = por %p220, %p221
      %p223 = scmp.le.s32.totalorder 1, %s16
      %p224 = scmp.lt.s32.totalorder %s16, 3
      %p225 = pnand %p223, %p224
      %p226 = pneg %p225
      // Predicated region
      $region9: #{deep_llm_forward.1} parent=5 // pred_check
        _
      $region10: #{deep_llm_forward.1} parent=5 // pred_check_branch
        %228 = sbr.rel (%p225) target = $region12
      $region11: #{deep_llm_forward.1} parent=5 // pred_region
        %s229 = ssub.s32 %s16, 1
        // Predicated region
        $region13: #{deep_llm_forward.1} parent=11 // pred_check
          %p230 = pneg %p37
        $region14: #{deep_llm_forward.1} parent=11 // pred_check_branch
          %232 = sbr.rel (%p230) target = $region16
        $region15: #{deep_llm_forward.1} parent=11 // pred_region
          _
        $region16: #{deep_llm_forward.1} parent=11 // pred_fallthru
          _
        // Predicated region
        $region17: #{deep_llm_forward.1} parent=11 // pred_check
          %p233 = pneg %p58
        $region18: #{deep_llm_forward.1} parent=11 // pred_check_branch
          %235 = sbr.rel (%p233) target = $region20
        $region19: #{deep_llm_forward.1} parent=11 // pred_region
          %237 = vsyncadd [#allocation4], 0
          %s238 = sshll.u32 %s1, 4
          %s239 = int_to_ptr.hbm [resolvable:$true] %s238
          %s240 = sshll.u32 [#allocation3], 4
          %s241 = int_to_ptr.vmem [resolvable:$true] %s240
          %246 = dma.hbm_to_vmem [thread:$0]  %s239, 1024, %s241, [#allocation4], 64, 64, 4
        $region20: #{deep_llm_forward.1} parent=11 // pred_fallthru
          _
        // Predicated region
        $region21: #{deep_llm_forward.1} parent=11 // pred_check
          %p247 = pneg %p79
        $region22: #{deep_llm_forward.1} parent=11 // pred_check_branch
          %249 = sbr.rel (%p247) target = $region24
        $region23: #{deep_llm_forward.1} parent=11 // pred_region
          %251 = vsyncadd [#allocation6], 0
          %s252 = sshll.u32 %s2, 4
          %s253 = int_to_ptr.hbm [resolvable:$true] %s252
          %s254 = sshll.u32 [#allocation5], 4
          %s255 = int_to_ptr.vmem [resolvable:$true] %s254
          %260 = dma.hbm_to_vmem [thread:$0]  %s253, 1024, %s255, [#allocation6], 64, 64, 4
        $region24: #{deep_llm_forward.1} parent=11 // pred_fallthru
          _
        // Predicated region
        $region25: #{deep_llm_forward.1} parent=11 // pred_check
          %p261 = pneg %p100
        $region26: #{deep_llm_forward.1} parent=11 // pred_check_branch
          %263 = sbr.rel (%p261) target = $region28
        $region27: #{deep_llm_forward.1} parent=11 // pred_region
          _
        $region28: #{deep_llm_forward.1} parent=11 // pred_fallthru
          _
        // Predicated region
        $region29: #{deep_llm_forward.1} parent=11 // pred_check
          %p264 = pneg %p173
        $region30: #{deep_llm_forward.1} parent=11 // pred_check_branch
          %266 = sbr.rel (%p264) target = $region32
        $region31: #{deep_llm_forward.1} parent=11 // pred_region
          %268 = vsyncadd [#allocation6], 0
          %s269 = sshll.u32 %s6, 4
          %s270 = int_to_ptr.hbm [resolvable:$true] %s269
          %s271 = sshll.u32 [#allocation9], 4
          %s272 = int_to_ptr.vmem [resolvable:$true] %s271
          %277 = dma.hbm_to_vmem [thread:$0]  %s270, 1024, %s272, [#allocation6], 64, 64, 4
        $region32: #{deep_llm_forward.1} parent=11 // pred_fallthru
          _
        // Predicated region
        $region33: #{deep_llm_forward.1} parent=11 // pred_check
          %p278 = pneg %p194
        $region34: #{deep_llm_forward.1} parent=11 // pred_check_branch
          %280 = sbr.rel (%p278) target = $region36
        $region35: #{deep_llm_forward.1} parent=11 // pred_region
          _
        $region36: #{deep_llm_forward.1} parent=11 // pred_fallthru
          _
      $region12: #{deep_llm_forward.1} parent=5 // pred_fallthru
        _
      %p281 = scmp.lt.s32.totalorder %s16, 2
      // Predicated region
      $region37: #{deep_llm_forward.1} parent=5 // pred_check
        %p282 = pneg %p281
      $region38: #{deep_llm_forward.1} parent=5 // pred_check_branch
        %284 = sbr.rel (%p282) target = $region40
      $region39: #{deep_llm_forward.1} parent=5 // pred_region
        // Predicated region
        $region41: #{deep_llm_forward.1} parent=39 // pred_check
          %p285 = pneg %p120
        $region42: #{deep_llm_forward.1} parent=39 // pred_check_branch
          %287 = sbr.rel (%p285) target = $region44
        $region43: #{deep_llm_forward.1} parent=39 // pred_region
          %s288 = sand.u32 %s16, 1
          %s289 = scalar_lea.sflag [#allocation4], %s288
          %s290 = sand.u32 %s110, 1
          %s291 = smul.addr %s290, 512
          %s292 = scalar_lea.vmem [#allocation7], %s291
          %s293 = smul.u32 4, %s16
          %295 = vsyncadd %s289, 0
          %s296 = smul.addr %s293, 32
          %s297 = smul.addr %s296, 4
          %s298 = scalar_lea.hbm %s4, %s297
          %s299 = sshll.u32 %s298, 4
          %s300 = int_to_ptr.hbm [resolvable:$true] %s299
          %s301 = sshll.u32 %s292, 4
          %s302 = int_to_ptr.vmem [resolvable:$true] %s301
          %307 = dma.hbm_to_vmem [thread:$0]  %s300, 8192, %s302, %s289, 64, 64, 4
        $region44: #{deep_llm_forward.1} parent=39 // pred_fallthru
          _
        // Predicated region
        $region45: #{deep_llm_forward.1} parent=39 // pred_check
          %p308 = pneg %p146
        $region46: #{deep_llm_forward.1} parent=39 // pred_check_branch
          %310 = sbr.rel (%p308) target = $region48
        $region47: #{deep_llm_forward.1} parent=39 // pred_region
          %s311 = sand.u32 %s16, 1
          %s312 = scalar_lea.sflag [#allocation4], %s311
          %s313 = sand.u32 %s136, 1
          %s314 = smul.addr %s313, 8
          %s315 = scalar_lea.vmem [#allocation8], %s314
          %s316 = smul.u32 4, %s16
          %318 = vsyncadd %s312, 0
          %s319 = smul.addr %s316, 2
          %s320 = scalar_lea.hbm %s5, %s319
          %s321 = sshll.u32 %s320, 4
          %s322 = int_to_ptr.hbm [resolvable:$true] %s321
          %s323 = sshll.u32 %s315, 4
          %s324 = int_to_ptr.vmem [resolvable:$true] %s323
          %329 = dma.hbm_to_vmem [thread:$0]  %s322, 128, %s324, %s312, 16, 16, 1
        $region48: #{deep_llm_forward.1} parent=39 // pred_fallthru
          _
      $region40: #{deep_llm_forward.1} parent=5 // pred_fallthru
        _
      %p330 = scmp.le.s32.totalorder 1, %s16
      %p331 = scmp.lt.s32.totalorder %s16, 3
      %p332 = pnand %p330, %p331
      %p333 = pneg %p332
      // Predicated region
      $region49: #{deep_llm_forward.1} parent=5 // pred_check
        _
      $region50: #{deep_llm_forward.1} parent=5 // pred_check_branch
        %335 = sbr.rel (%p332) target = $region52
      $region51: #{deep_llm_forward.1} parent=5 // pred_region
        %s336 = ssub.s32 %s16, 1
        // Predicated region
        $region53: #{deep_llm_forward.1} parent=51 // pred_check
          %p337 = pneg %p58
        $region54: #{deep_llm_forward.1} parent=51 // pred_check_branch
          %339 = sbr.rel (%p337) target = $region56
        $region55: #{deep_llm_forward.1} parent=51 // pred_region
          %341 = dma.done [#allocation4], 1024
        $region56: #{deep_llm_forward.1} parent=51 // pred_fallthru
          _
        // Predicated region
        $region57: #{deep_llm_forward.1} parent=51 // pred_check
          %p342 = pneg %p79
        $region58: #{deep_llm_forward.1} parent=51 // pred_check_branch
          %344 = sbr.rel (%p342) target = $region60
        $region59: #{deep_llm_forward.1} parent=51 // pred_region
          %346 = dma.done [#allocation6], 1024
        $region60: #{deep_llm_forward.1} parent=51 // pred_fallthru
          _
        %s347 = sand.u32 %s21, 1
        %s348 = scalar_lea.sflag [#allocation4], %s347
        %s349 = sand.u32 %s113, 1
        %s350 = smul.addr %s349, 512
        %s351 = scalar_lea.vmem [#allocation7], %s350
        // Predicated region
        $region61: #{deep_llm_forward.1} parent=51 // pred_check
          %p352 = pneg %p126
        $region62: #{deep_llm_forward.1} parent=51 // pred_check_branch
          %354 = sbr.rel (%p352) target = $region64
        $region63: #{deep_llm_forward.1} parent=51 // pred_region
          %356 = dma.done %s348, 8192
        $region64: #{deep_llm_forward.1} parent=51 // pred_fallthru
          _
        %s357 = sand.u32 %s21, 1
        %s358 = scalar_lea.sflag [#allocation4], %s357
        %s359 = sand.u32 %s139, 1
        %s360 = smul.addr %s359, 8
        %s361 = scalar_lea.vmem [#allocation8], %s360
        // Predicated region
        $region65: #{deep_llm_forward.1} parent=51 // pred_check
          %p362 = pneg %p152
        $region66: #{deep_llm_forward.1} parent=51 // pred_check_branch
          %364 = sbr.rel (%p362) target = $region68
        $region67: #{deep_llm_forward.1} parent=51 // pred_region
          %366 = dma.done %s358, 128
        $region68: #{deep_llm_forward.1} parent=51 // pred_fallthru
          _
        // Predicated region
        $region69: #{deep_llm_forward.1} parent=51 // pred_check
          %p367 = pneg %p173
        $region70: #{deep_llm_forward.1} parent=51 // pred_check_branch
          %369 = sbr.rel (%p367) target = $region72
        $region71: #{deep_llm_forward.1} parent=51 // pred_region
          %371 = dma.done [#allocation6], 1024
        $region72: #{deep_llm_forward.1} parent=51 // pred_fallthru
          _
        %p372 = pneg %p37
        %p373 = pneg %p34
        %p374 = pneg %p58
        %p375 = pneg %p55
        %p376 = pneg %p79
        %p377 = pneg %p76
        %p378 = pneg %p100
        %p379 = pneg %p97
        %s380 = sand.u32 %s21, 1
        %s381 = scalar_lea.sflag [#allocation4], %s380
        %s382 = sand.u32 %s113, 1
        %s383 = smul.addr %s382, 512
        %s384 = scalar_lea.vmem [#allocation7], %s383
        %p385 = pneg %p126
        %p386 = pneg %p123
        %s387 = sand.u32 %s21, 1
        %s388 = scalar_lea.sflag [#allocation4], %s387
        %s389 = sand.u32 %s139, 1
        %s390 = smul.addr %s389, 8
        %s391 = scalar_lea.vmem [#allocation8], %s390
        %p392 = pneg %p152
        %p393 = pneg %p149
        %p394 = pneg %p173
        %p395 = pneg %p170
        %p396 = pneg %p194
        %p397 = pneg %p191
        %p398 = pneg %p215
        %p399 = pneg %p212
        %s400 = smul.u32 4, %s21
        %s401 = smul.u32 4, %s21
        %p402 = scmp.eq.s32.totalorder %s21, 0
        // Predicated region
        $region73: #{deep_llm_forward.1} parent=51 // pred_check
          %p403 = pneg %p402
        $region74: #{deep_llm_forward.1} parent=51 // pred_check_branch
          %405 = sbr.rel (%p403) target = $region76
        $region75: #{deep_llm_forward.1} parent=51 // pred_region
          %v406 = vld [vmem:[%s0] sm:$0xff]
          %v407 = vlaneseq
          %v408 = vand.u32 %v407, 127
          %409 = vset.pattern.permute.xlu0 0
          %410 = vperm.xlu0 %409, %v406
          %v411 = vpop.permute.xlu0 %410
          %vm412 = vcmp.eq.s32.totalorder %v408, %v411
          %v413 = vsel %vm412, 1, 0
          %v414 = vcvt.s32.f32 %v413
          %v415 = vadd.f32 %v414, 0.0
          %416 = vset.pattern.permute.xlu0 1
          %417 = vperm.xlu0 %416, %v406
          %v418 = vpop.permute.xlu0 %417
          %vm419 = vcmp.eq.s32.totalorder %v408, %v418
          %v420 = vsel %vm419, 1, 0
          %v421 = vcvt.s32.f32 %v420
          %v422 = vadd.f32 %v415, %v421
          %423 = vset.pattern.permute.xlu0 2
          %424 = vperm.xlu0 %423, %v406
          %v425 = vpop.permute.xlu0 %424
          %vm426 = vcmp.eq.s32.totalorder %v408, %v425
          %v427 = vsel %vm426, 1, 0
          %v428 = vcvt.s32.f32 %v427
          %v429 = vadd.f32 %v422, %v428
          %430 = vset.pattern.permute.xlu0 3
          %431 = vperm.xlu0 %430, %v406
          %v432 = vpop.permute.xlu0 %431
          %vm433 = vcmp.eq.s32.totalorder %v408, %v432
          %v434 = vsel %vm433, 1, 0
          %v435 = vcvt.s32.f32 %v434
          %v436 = vadd.f32 %v429, %v435
          %437 = vset.pattern.permute.xlu0 4
          %438 = vperm.xlu0 %437, %v406
          %v439 = vpop.permute.xlu0 %438
          %vm440 = vcmp.eq.s32.totalorder %v408, %v439
          %v441 = vsel %vm440, 1, 0
          %v442 = vcvt.s32.f32 %v441
          %v443 = vadd.f32 %v436, %v442
          %444 = vset.pattern.permute.xlu0 5
          %445 = vperm.xlu0 %444, %v406
          %v446 = vpop.permute.xlu0 %445
          %vm447 = vcmp.eq.s32.totalorder %v408, %v446
          %v448 = vsel %vm447, 1, 0
          %v449 = vcvt.s32.f32 %v448
          %v450 = vadd.f32 %v443, %v449
          %451 = vset.pattern.permute.xlu0 6
          %452 = vperm.xlu0 %451, %v406
          %v453 = vpop.permute.xlu0 %452
          %vm454 = vcmp.eq.s32.totalorder %v408, %v453
          %v455 = vsel %vm454, 1, 0
          %v456 = vcvt.s32.f32 %v455
          %v457 = vadd.f32 %v450, %v456
          %458 = vset.pattern.permute.xlu0 7
          %459 = vperm.xlu0 %458, %v406
          %v460 = vpop.permute.xlu0 %459
          %vm461 = vcmp.eq.s32.totalorder %v408, %v460
          %v462 = vsel %vm461, 1, 0
          %v463 = vcvt.s32.f32 %v462
          %v464 = vadd.f32 %v457, %v463
          %v465 = vmul.f32 %v464, 0.125
          %v466 = vpack.c.bf16 %v465, %v465
          %v467 = vld [vmem:[#allocation3] sm:$0xf]
          %v468 = vld [vmem:[#allocation3 + $0x4] sm:$0xf]
          %v469 = vld [vmem:[#allocation3 + $0x8] sm:$0xf]
          %v470 = vld [vmem:[#allocation3 + $0xc] sm:$0xf]
          %v471 = vld [vmem:[#allocation3 + $0x10] sm:$0xf]
          %v472 = vld [vmem:[#allocation3 + $0x14] sm:$0xf]
          %v473 = vld [vmem:[#allocation3 + $0x18] sm:$0xf]
          %v474 = vld [vmem:[#allocation3 + $0x1c] sm:$0xf]
          %v475 = vld [vmem:[#allocation3 + $0x20] sm:$0xf]
          %v476 = vld [vmem:[#allocation3 + $0x24] sm:$0xf]
          %v477 = vld [vmem:[#allocation3 + $0x28] sm:$0xf]
          %v478 = vld [vmem:[#allocation3 + $0x2c] sm:$0xf]
          %v479 = vld [vmem:[#allocation3 + $0x30] sm:$0xf]
          %v480 = vld [vmem:[#allocation3 + $0x34] sm:$0xf]
          %v481 = vld [vmem:[#allocation3 + $0x38] sm:$0xf]
          %v482 = vld [vmem:[#allocation3 + $0x3c] sm:$0xf]
          %v499 = vunpack.c.l.b16 %v467
          %v500 = vunpack.c.l.b16 %v468
          %v501 = vunpack.c.l.b16 %v469
          %v502 = vunpack.c.l.b16 %v470
          %v503 = vunpack.c.l.b16 %v471
          %v504 = vunpack.c.l.b16 %v472
          %v505 = vunpack.c.l.b16 %v473
          %v506 = vunpack.c.l.b16 %v474
          %v507 = vunpack.c.l.b16 %v475
          %v508 = vunpack.c.l.b16 %v476
          %v509 = vunpack.c.l.b16 %v477
          %v510 = vunpack.c.l.b16 %v478
          %v511 = vunpack.c.l.b16 %v479
          %v512 = vunpack.c.l.b16 %v480
          %v513 = vunpack.c.l.b16 %v481
          %v514 = vunpack.c.l.b16 %v482
          %v515 = vpack.c.b16 %v500, %v499
          %v516 = vpack.c.b16 %v502, %v501
          %v517 = vpack.c.b16 %v504, %v503
          %v518 = vpack.c.b16 %v506, %v505
          %v519 = vpack.c.b16 %v508, %v507
          %v520 = vpack.c.b16 %v510, %v509
          %v521 = vpack.c.b16 %v512, %v511
          %v522 = vpack.c.b16 %v514, %v513
          %531 = vmatpush.bf16.msra.mxu0 %v522
          %532 = vmatpush.bf16.msra.mxu0 %v521
          %533 = vmatpush.bf16.msra.mxu0 %v520
          %534 = vmatpush.bf16.msra.mxu0 %v519
          %535 = vmatpush.bf16.msra.mxu0 %v518
          %536 = vmatpush.bf16.msra.mxu0 %v517
          %537 = vmatpush.bf16.msra.mxu0 %v516
          %538 = vmatpush.bf16.msra.mxu0 %v515
          %539 = vmatmul.bf16.gmra.mxu0 %v466
          %v540 = vpop.f32.mrf.mxu0
          %v541 = vadd.f32 0.0, %v540
          %v542 = vpop.f32.mrf.mxu0
          %543 = vdwg.mxu0
          %v544 = vpack.c.bf16 %v541, %v541
          %v545 = vld [vmem:[#allocation5] sm:$0xf]
          %v546 = vld [vmem:[#allocation5 + $0x4] sm:$0xf]
          %v547 = vld [vmem:[#allocation5 + $0x8] sm:$0xf]
          %v548 = vld [vmem:[#allocation5 + $0xc] sm:$0xf]
          %v549 = vld [vmem:[#allocation5 + $0x10] sm:$0xf]
          %v550 = vld [vmem:[#allocation5 + $0x14] sm:$0xf]
          %v551 = vld [vmem:[#allocation5 + $0x18] sm:$0xf]
          %v552 = vld [vmem:[#allocation5 + $0x1c] sm:$0xf]
          %v553 = vld [vmem:[#allocation5 + $0x20] sm:$0xf]
          %v554 = vld [vmem:[#allocation5 + $0x24] sm:$0xf]
          %v555 = vld [vmem:[#allocation5 + $0x28] sm:$0xf]
          %v556 = vld [vmem:[#allocation5 + $0x2c] sm:$0xf]
          %v557 = vld [vmem:[#allocation5 + $0x30] sm:$0xf]
          %v558 = vld [vmem:[#allocation5 + $0x34] sm:$0xf]
          %v559 = vld [vmem:[#allocation5 + $0x38] sm:$0xf]
          %v560 = vld [vmem:[#allocation5 + $0x3c] sm:$0xf]
          %v561 = vld [vmem:[%s3] sm:$0x1]
          %v563 = vperm.slane %v561, 0
          %v581 = vunpack.c.l.b16 %v545
          %v582 = vunpack.c.l.b16 %v546
          %v583 = vunpack.c.l.b16 %v547
          %v584 = vunpack.c.l.b16 %v548
          %v585 = vunpack.c.l.b16 %v549
          %v586 = vunpack.c.l.b16 %v550
          %v587 = vunpack.c.l.b16 %v551
          %v588 = vunpack.c.l.b16 %v552
          %v589 = vunpack.c.l.b16 %v553
          %v590 = vunpack.c.l.b16 %v554
          %v591 = vunpack.c.l.b16 %v555
          %v592 = vunpack.c.l.b16 %v556
          %v593 = vunpack.c.l.b16 %v557
          %v594 = vunpack.c.l.b16 %v558
          %v595 = vunpack.c.l.b16 %v559
          %v596 = vunpack.c.l.b16 %v560
          %v597 = vpack.c.b16 %v582, %v581
          %v598 = vpack.c.b16 %v584, %v583
          %v599 = vpack.c.b16 %v586, %v585
          %v600 = vpack.c.b16 %v588, %v587
          %v601 = vpack.c.b16 %v590, %v589
          %v602 = vpack.c.b16 %v592, %v591
          %v603 = vpack.c.b16 %v594, %v593
          %v604 = vpack.c.b16 %v596, %v595
          %613 = vmatpush.bf16.msra.mxu0 %v604
          %614 = vmatpush.bf16.msra.mxu0 %v603
          %615 = vmatpush.bf16.msra.mxu0 %v602
          %616 = vmatpush.bf16.msra.mxu0 %v601
          %617 = vmatpush.bf16.msra.mxu0 %v600
          %618 = vmatpush.bf16.msra.mxu0 %v599
          %619 = vmatpush.bf16.msra.mxu0 %v598
          %620 = vmatpush.bf16.msra.mxu0 %v597
          %621 = vmatmul.bf16.gmra.mxu0 %v544
          %v622 = vpop.f32.mrf.mxu0
          %v623 = vadd.f32 %v563, %v622
          %v624 = vpop.f32.mrf.mxu0
          %625 = vdwg.mxu0
          %626 = vst [vmem:[#allocation2] sm:$0xff] %v623
        $region76: #{deep_llm_forward.1} parent=51 // pred_fallthru
          _
        %v627 = vld [vmem:[#allocation2] sm:$0xff]
        %v628 = vpack.c.bf16 %v627, %v627
        %v629 = vld [vmem:[%s351] sm:$0xf]
        %v630 = vld [vmem:[%s351 + $0x4] sm:$0xf]
        %v631 = vld [vmem:[%s351 + $0x8] sm:$0xf]
        %v632 = vld [vmem:[%s351 + $0xc] sm:$0xf]
        %v633 = vld [vmem:[%s351 + $0x10] sm:$0xf]
        %v634 = vld [vmem:[%s351 + $0x14] sm:$0xf]
        %v635 = vld [vmem:[%s351 + $0x18] sm:$0xf]
        %v636 = vld [vmem:[%s351 + $0x1c] sm:$0xf]
        %v637 = vld [vmem:[%s351 + $0x20] sm:$0xf]
        %v638 = vld [vmem:[%s351 + $0x24] sm:$0xf]
        %v639 = vld [vmem:[%s351 + $0x28] sm:$0xf]
        %v640 = vld [vmem:[%s351 + $0x2c] sm:$0xf]
        %v641 = vld [vmem:[%s351 + $0x30] sm:$0xf]
        %v642 = vld [vmem:[%s351 + $0x34] sm:$0xf]
        %v643 = vld [vmem:[%s351 + $0x38] sm:$0xf]
        %v644 = vld [vmem:[%s351 + $0x3c] sm:$0xf]
        %v645 = vld [vmem:[%s361] sm:$0x1]
        %v647 = vperm.slane %v645, 0
        %v665 = vunpack.c.l.b16 %v629
        %v666 = vunpack.c.l.b16 %v630
        %v667 = vunpack.c.l.b16 %v631
        %v668 = vunpack.c.l.b16 %v632
        %v669 = vunpack.c.l.b16 %v633
        %v670 = vunpack.c.l.b16 %v634
        %v671 = vunpack.c.l.b16 %v635
        %v672 = vunpack.c.l.b16 %v636
        %v673 = vunpack.c.l.b16 %v637
        %v674 = vunpack.c.l.b16 %v638
        %v675 = vunpack.c.l.b16 %v639
        %v676 = vunpack.c.l.b16 %v640
        %v677 = vunpack.c.l.b16 %v641
        %v678 = vunpack.c.l.b16 %v642
        %v679 = vunpack.c.l.b16 %v643
        %v680 = vunpack.c.l.b16 %v644
        %v681 = vpack.c.b16 %v666, %v665
        %v682 = vpack.c.b16 %v668, %v667
        %v683 = vpack.c.b16 %v670, %v669
        %v684 = vpack.c.b16 %v672, %v671
        %v685 = vpack.c.b16 %v674, %v673
        %v686 = vpack.c.b16 %v676, %v675
        %v687 = vpack.c.b16 %v678, %v677
        %v688 = vpack.c.b16 %v680, %v679
        %697 = vmatpush.bf16.msra.mxu0 %v688
        %698 = vmatpush.bf16.msra.mxu0 %v687
        %699 = vmatpush.bf16.msra.mxu0 %v686
        %700 = vmatpush.bf16.msra.mxu0 %v685
        %701 = vmatpush.bf16.msra.mxu0 %v684
        %702 = vmatpush.bf16.msra.mxu0 %v683
        %703 = vmatpush.bf16.msra.mxu0 %v682
        %704 = vmatpush.bf16.msra.mxu0 %v681
        %705 = vmatmul.bf16.gmra.mxu0 %v628
        %v706 = vpop.f32.mrf.mxu0
        %v707 = vadd.f32 %v647, %v706
        %v708 = vpop.f32.mrf.mxu0
        %709 = vdwg.mxu0
        %v710 = vmax.f32 %v707, 0.0
        %v711 = vpack.c.bf16 %v710, %v710
        %s712 = scalar_lea.vmem %s351, 64 [#allocation7]
        %v713 = vld [vmem:[%s712] sm:$0xf]
        %v714 = vld [vmem:[%s712 + $0x4] sm:$0xf]
        %v715 = vld [vmem:[%s712 + $0x8] sm:$0xf]
        %v716 = vld [vmem:[%s712 + $0xc] sm:$0xf]
        %v717 = vld [vmem:[%s712 + $0x10] sm:$0xf]
        %v718 = vld [vmem:[%s712 + $0x14] sm:$0xf]
        %v719 = vld [vmem:[%s712 + $0x18] sm:$0xf]
        %v720 = vld [vmem:[%s712 + $0x1c] sm:$0xf]
        %v721 = vld [vmem:[%s712 + $0x20] sm:$0xf]
        %v722 = vld [vmem:[%s712 + $0x24] sm:$0xf]
        %v723 = vld [vmem:[%s712 + $0x28] sm:$0xf]
        %v724 = vld [vmem:[%s712 + $0x2c] sm:$0xf]
        %v725 = vld [vmem:[%s712 + $0x30] sm:$0xf]
        %v726 = vld [vmem:[%s712 + $0x34] sm:$0xf]
        %v727 = vld [vmem:[%s712 + $0x38] sm:$0xf]
        %v728 = vld [vmem:[%s712 + $0x3c] sm:$0xf]
        %s729 = scalar_lea.vmem %s361, 1 [#allocation8]
        %v730 = vld [vmem:[%s729] sm:$0x1]
        %v732 = vperm.slane %v730, 0
        %v750 = vunpack.c.l.b16 %v713
        %v751 = vunpack.c.l.b16 %v714
        %v752 = vunpack.c.l.b16 %v715
        %v753 = vunpack.c.l.b16 %v716
        %v754 = vunpack.c.l.b16 %v717
        %v755 = vunpack.c.l.b16 %v718
        %v756 = vunpack.c.l.b16 %v719
        %v757 = vunpack.c.l.b16 %v720
        %v758 = vunpack.c.l.b16 %v721
        %v759 = vunpack.c.l.b16 %v722
        %v760 = vunpack.c.l.b16 %v723
        %v761 = vunpack.c.l.b16 %v724
        %v762 = vunpack.c.l.b16 %v725
        %v763 = vunpack.c.l.b16 %v726
        %v764 = vunpack.c.l.b16 %v727
        %v765 = vunpack.c.l.b16 %v728
        %v766 = vpack.c.b16 %v751, %v750
        %v767 = vpack.c.b16 %v753, %v752
        %v768 = vpack.c.b16 %v755, %v754
        %v769 = vpack.c.b16 %v757, %v756
        %v770 = vpack.c.b16 %v759, %v758
        %v771 = vpack.c.b16 %v761, %v760
        %v772 = vpack.c.b16 %v763, %v762
        %v773 = vpack.c.b16 %v765, %v764
        %782 = vmatpush.bf16.msra.mxu0 %v773
        %783 = vmatpush.bf16.msra.mxu0 %v772
        %784 = vmatpush.bf16.msra.mxu0 %v771
        %785 = vmatpush.bf16.msra.mxu0 %v770
        %786 = vmatpush.bf16.msra.mxu0 %v769
        %787 = vmatpush.bf16.msra.mxu0 %v768
        %788 = vmatpush.bf16.msra.mxu0 %v767
        %789 = vmatpush.bf16.msra.mxu0 %v766
        %790 = vmatmul.bf16.gmra.mxu0 %v711
        %v791 = vpop.f32.mrf.mxu0
        %v792 = vadd.f32 %v732, %v791
        %v793 = vpop.f32.mrf.mxu0
        %794 = vdwg.mxu0
        %v795 = vadd.f32 %v792, %v627
        %v796 = vmax.f32 %v795, 0.0
        %v797 = vpack.c.bf16 %v796, %v796
        %s798 = scalar_lea.vmem %s351, 128 [#allocation7]
        %v799 = vld [vmem:[%s798] sm:$0xf]
        %v800 = vld [vmem:[%s798 + $0x4] sm:$0xf]
        %v801 = vld [vmem:[%s798 + $0x8] sm:$0xf]
        %v802 = vld [vmem:[%s798 + $0xc] sm:$0xf]
        %v803 = vld [vmem:[%s798 + $0x10] sm:$0xf]
        %v804 = vld [vmem:[%s798 + $0x14] sm:$0xf]
        %v805 = vld [vmem:[%s798 + $0x18] sm:$0xf]
        %v806 = vld [vmem:[%s798 + $0x1c] sm:$0xf]
        %v807 = vld [vmem:[%s798 + $0x20] sm:$0xf]
        %v808 = vld [vmem:[%s798 + $0x24] sm:$0xf]
        %v809 = vld [vmem:[%s798 + $0x28] sm:$0xf]
        %v810 = vld [vmem:[%s798 + $0x2c] sm:$0xf]
        %v811 = vld [vmem:[%s798 + $0x30] sm:$0xf]
        %v812 = vld [vmem:[%s798 + $0x34] sm:$0xf]
        %v813 = vld [vmem:[%s798 + $0x38] sm:$0xf]
        %v814 = vld [vmem:[%s798 + $0x3c] sm:$0xf]
        %s815 = scalar_lea.vmem %s361, 2 [#allocation8]
        %v816 = vld [vmem:[%s815] sm:$0x1]
        %v818 = vperm.slane %v816, 0
        %v836 = vunpack.c.l.b16 %v799
        %v837 = vunpack.c.l.b16 %v800
        %v838 = vunpack.c.l.b16 %v801
        %v839 = vunpack.c.l.b16 %v802
        %v840 = vunpack.c.l.b16 %v803
        %v841 = vunpack.c.l.b16 %v804
        %v842 = vunpack.c.l.b16 %v805
        %v843 = vunpack.c.l.b16 %v806
        %v844 = vunpack.c.l.b16 %v807
        %v845 = vunpack.c.l.b16 %v808
        %v846 = vunpack.c.l.b16 %v809
        %v847 = vunpack.c.l.b16 %v810
        %v848 = vunpack.c.l.b16 %v811
        %v849 = vunpack.c.l.b16 %v812
        %v850 = vunpack.c.l.b16 %v813
        %v851 = vunpack.c.l.b16 %v814
        %v852 = vpack.c.b16 %v837, %v836
        %v853 = vpack.c.b16 %v839, %v838
        %v854 = vpack.c.b16 %v841, %v840
        %v855 = vpack.c.b16 %v843, %v842
        %v856 = vpack.c.b16 %v845, %v844
        %v857 = vpack.c.b16 %v847, %v846
        %v858 = vpack.c.b16 %v849, %v848
        %v859 = vpack.c.b16 %v851, %v850
        %868 = vmatpush.bf16.msra.mxu0 %v859
        %869 = vmatpush.bf16.msra.mxu0 %v858
        %870 = vmatpush.bf16.msra.mxu0 %v857
        %871 = vmatpush.bf16.msra.mxu0 %v856
        %872 = vmatpush.bf16.msra.mxu0 %v855
        %873 = vmatpush.bf16.msra.mxu0 %v854
        %874 = vmatpush.bf16.msra.mxu0 %v853
        %875 = vmatpush.bf16.msra.mxu0 %v852
        %876 = vmatmul.bf16.gmra.mxu0 %v797
        %v877 = vpop.f32.mrf.mxu0
        %v878 = vadd.f32 %v818, %v877
        %v879 = vpop.f32.mrf.mxu0
        %880 = vdwg.mxu0
        %v881 = vmax.f32 %v878, 0.0
        %v882 = vpack.c.bf16 %v881, %v881
        %s883 = scalar_lea.vmem %s351, 192 [#allocation7]
        %v884 = vld [vmem:[%s883] sm:$0xf]
        %v885 = vld [vmem:[%s883 + $0x4] sm:$0xf]
        %v886 = vld [vmem:[%s883 + $0x8] sm:$0xf]
        %v887 = vld [vmem:[%s883 + $0xc] sm:$0xf]
        %v888 = vld [vmem:[%s883 + $0x10] sm:$0xf]
        %v889 = vld [vmem:[%s883 + $0x14] sm:$0xf]
        %v890 = vld [vmem:[%s883 + $0x18] sm:$0xf]
        %v891 = vld [vmem:[%s883 + $0x1c] sm:$0xf]
        %v892 = vld [vmem:[%s883 + $0x20] sm:$0xf]
        %v893 = vld [vmem:[%s883 + $0x24] sm:$0xf]
        %v894 = vld [vmem:[%s883 + $0x28] sm:$0xf]
        %v895 = vld [vmem:[%s883 + $0x2c] sm:$0xf]
        %v896 = vld [vmem:[%s883 + $0x30] sm:$0xf]
        %v897 = vld [vmem:[%s883 + $0x34] sm:$0xf]
        %v898 = vld [vmem:[%s883 + $0x38] sm:$0xf]
        %v899 = vld [vmem:[%s883 + $0x3c] sm:$0xf]
        %s900 = scalar_lea.vmem %s361, 3 [#allocation8]
        %v901 = vld [vmem:[%s900] sm:$0x1]
        %v903 = vperm.slane %v901, 0
        %v921 = vunpack.c.l.b16 %v884
        %v922 = vunpack.c.l.b16 %v885
        %v923 = vunpack.c.l.b16 %v886
        %v924 = vunpack.c.l.b16 %v887
        %v925 = vunpack.c.l.b16 %v888
        %v926 = vunpack.c.l.b16 %v889
        %v927 = vunpack.c.l.b16 %v890
        %v928 = vunpack.c.l.b16 %v891
        %v929 = vunpack.c.l.b16 %v892
        %v930 = vunpack.c.l.b16 %v893
        %v931 = vunpack.c.l.b16 %v894
        %v932 = vunpack.c.l.b16 %v895
        %v933 = vunpack.c.l.b16 %v896
        %v934 = vunpack.c.l.b16 %v897
        %v935 = vunpack.c.l.b16 %v898
        %v936 = vunpack.c.l.b16 %v899
        %v937 = vpack.c.b16 %v922, %v921
        %v938 = vpack.c.b16 %v924, %v923
        %v939 = vpack.c.b16 %v926, %v925
        %v940 = vpack.c.b16 %v928, %v927
        %v941 = vpack.c.b16 %v930, %v929
        %v942 = vpack.c.b16 %v932, %v931
        %v943 = vpack.c.b16 %v934, %v933
        %v944 = vpack.c.b16 %v936, %v935
        %953 = vmatpush.bf16.msra.mxu0 %v944
        %954 = vmatpush.bf16.msra.mxu0 %v943
        %955 = vmatpush.bf16.msra.mxu0 %v942
        %956 = vmatpush.bf16.msra.mxu0 %v941
        %957 = vmatpush.bf16.msra.mxu0 %v940
        %958 = vmatpush.bf16.msra.mxu0 %v939
        %959 = vmatpush.bf16.msra.mxu0 %v938
        %960 = vmatpush.bf16.msra.mxu0 %v937
        %961 = vmatmul.bf16.gmra.mxu0 %v882
        %v962 = vpop.f32.mrf.mxu0
        %v963 = vadd.f32 %v903, %v962
        %v964 = vpop.f32.mrf.mxu0
        %965 = vdwg.mxu0
        %v966 = vadd.f32 %v963, %v796
        %v967 = vmax.f32 %v966, 0.0
        %v968 = vpack.c.bf16 %v967, %v967
        %s969 = scalar_lea.vmem %s351, 256 [#allocation7]
        %v970 = vld [vmem:[%s969] sm:$0xf]
        %v971 = vld [vmem:[%s969 + $0x4] sm:$0xf]
        %v972 = vld [vmem:[%s969 + $0x8] sm:$0xf]
        %v973 = vld [vmem:[%s969 + $0xc] sm:$0xf]
        %v974 = vld [vmem:[%s969 + $0x10] sm:$0xf]
        %v975 = vld [vmem:[%s969 + $0x14] sm:$0xf]
        %v976 = vld [vmem:[%s969 + $0x18] sm:$0xf]
        %v977 = vld [vmem:[%s969 + $0x1c] sm:$0xf]
        %v978 = vld [vmem:[%s969 + $0x20] sm:$0xf]
        %v979 = vld [vmem:[%s969 + $0x24] sm:$0xf]
        %v980 = vld [vmem:[%s969 + $0x28] sm:$0xf]
        %v981 = vld [vmem:[%s969 + $0x2c] sm:$0xf]
        %v982 = vld [vmem:[%s969 + $0x30] sm:$0xf]
        %v983 = vld [vmem:[%s969 + $0x34] sm:$0xf]
        %v984 = vld [vmem:[%s969 + $0x38] sm:$0xf]
        %v985 = vld [vmem:[%s969 + $0x3c] sm:$0xf]
        %s986 = scalar_lea.vmem %s361, 4 [#allocation8]
        %v987 = vld [vmem:[%s986] sm:$0x1]
        %v989 = vperm.slane %v987, 0
        %v1007 = vunpack.c.l.b16 %v970
        %v1008 = vunpack.c.l.b16 %v971
        %v1009 = vunpack.c.l.b16 %v972
        %v1010 = vunpack.c.l.b16 %v973
        %v1011 = vunpack.c.l.b16 %v974
        %v1012 = vunpack.c.l.b16 %v975
        %v1013 = vunpack.c.l.b16 %v976
        %v1014 = vunpack.c.l.b16 %v977
        %v1015 = vunpack.c.l.b16 %v978
        %v1016 = vunpack.c.l.b16 %v979
        %v1017 = vunpack.c.l.b16 %v980
        %v1018 = vunpack.c.l.b16 %v981
        %v1019 = vunpack.c.l.b16 %v982
        %v1020 = vunpack.c.l.b16 %v983
        %v1021 = vunpack.c.l.b16 %v984
        %v1022 = vunpack.c.l.b16 %v985
        %v1023 = vpack.c.b16 %v1008, %v1007
        %v1024 = vpack.c.b16 %v1010, %v1009
        %v1025 = vpack.c.b16 %v1012, %v1011
        %v1026 = vpack.c.b16 %v1014, %v1013
        %v1027 = vpack.c.b16 %v1016, %v1015
        %v1028 = vpack.c.b16 %v1018, %v1017
        %v1029 = vpack.c.b16 %v1020, %v1019
        %v1030 = vpack.c.b16 %v1022, %v1021
        %1039 = vmatpush.bf16.msra.mxu0 %v1030
        %1040 = vmatpush.bf16.msra.mxu0 %v1029
        %1041 = vmatpush.bf16.msra.mxu0 %v1028
        %1042 = vmatpush.bf16.msra.mxu0 %v1027
        %1043 = vmatpush.bf16.msra.mxu0 %v1026
        %1044 = vmatpush.bf16.msra.mxu0 %v1025
        %1045 = vmatpush.bf16.msra.mxu0 %v1024
        %1046 = vmatpush.bf16.msra.mxu0 %v1023
        %1047 = vmatmul.bf16.gmra.mxu0 %v968
        %v1048 = vpop.f32.mrf.mxu0
        %v1049 = vadd.f32 %v989, %v1048
        %v1050 = vpop.f32.mrf.mxu0
        %1051 = vdwg.mxu0
        %v1052 = vmax.f32 %v1049, 0.0
        %v1053 = vpack.c.bf16 %v1052, %v1052
        %s1054 = scalar_lea.vmem %s351, 320 [#allocation7]
        %v1055 = vld [vmem:[%s1054] sm:$0xf]
        %v1056 = vld [vmem:[%s1054 + $0x4] sm:$0xf]
        %v1057 = vld [vmem:[%s1054 + $0x8] sm:$0xf]
        %v1058 = vld [vmem:[%s1054 + $0xc] sm:$0xf]
        %v1059 = vld [vmem:[%s1054 + $0x10] sm:$0xf]
        %v1060 = vld [vmem:[%s1054 + $0x14] sm:$0xf]
        %v1061 = vld [vmem:[%s1054 + $0x18] sm:$0xf]
        %v1062 = vld [vmem:[%s1054 + $0x1c] sm:$0xf]
        %v1063 = vld [vmem:[%s1054 + $0x20] sm:$0xf]
        %v1064 = vld [vmem:[%s1054 + $0x24] sm:$0xf]
        %v1065 = vld [vmem:[%s1054 + $0x28] sm:$0xf]
        %v1066 = vld [vmem:[%s1054 + $0x2c] sm:$0xf]
        %v1067 = vld [vmem:[%s1054 + $0x30] sm:$0xf]
        %v1068 = vld [vmem:[%s1054 + $0x34] sm:$0xf]
        %v1069 = vld [vmem:[%s1054 + $0x38] sm:$0xf]
        %v1070 = vld [vmem:[%s1054 + $0x3c] sm:$0xf]
        %s1071 = scalar_lea.vmem %s361, 5 [#allocation8]
        %v1072 = vld [vmem:[%s1071] sm:$0x1]
        %v1074 = vperm.slane %v1072, 0
        %v1092 = vunpack.c.l.b16 %v1055
        %v1093 = vunpack.c.l.b16 %v1056
        %v1094 = vunpack.c.l.b16 %v1057
        %v1095 = vunpack.c.l.b16 %v1058
        %v1096 = vunpack.c.l.b16 %v1059
        %v1097 = vunpack.c.l.b16 %v1060
        %v1098 = vunpack.c.l.b16 %v1061
        %v1099 = vunpack.c.l.b16 %v1062
        %v1100 = vunpack.c.l.b16 %v1063
        %v1101 = vunpack.c.l.b16 %v1064
        %v1102 = vunpack.c.l.b16 %v1065
        %v1103 = vunpack.c.l.b16 %v1066
        %v1104 = vunpack.c.l.b16 %v1067
        %v1105 = vunpack.c.l.b16 %v1068
        %v1106 = vunpack.c.l.b16 %v1069
        %v1107 = vunpack.c.l.b16 %v1070
        %v1108 = vpack.c.b16 %v1093, %v1092
        %v1109 = vpack.c.b16 %v1095, %v1094
        %v1110 = vpack.c.b16 %v1097, %v1096
        %v1111 = vpack.c.b16 %v1099, %v1098
        %v1112 = vpack.c.b16 %v1101, %v1100
        %v1113 = vpack.c.b16 %v1103, %v1102
        %v1114 = vpack.c.b16 %v1105, %v1104
        %v1115 = vpack.c.b16 %v1107, %v1106
        %1124 = vmatpush.bf16.msra.mxu0 %v1115
        %1125 = vmatpush.bf16.msra.mxu0 %v1114
        %1126 = vmatpush.bf16.msra.mxu0 %v1113
        %1127 = vmatpush.bf16.msra.mxu0 %v1112
        %1128 = vmatpush.bf16.msra.mxu0 %v1111
        %1129 = vmatpush.bf16.msra.mxu0 %v1110
        %1130 = vmatpush.bf16.msra.mxu0 %v1109
        %1131 = vmatpush.bf16.msra.mxu0 %v1108
        %1132 = vmatmul.bf16.gmra.mxu0 %v1053
        %v1133 = vpop.f32.mrf.mxu0
        %v1134 = vadd.f32 %v1074, %v1133
        %v1135 = vpop.f32.mrf.mxu0
        %1136 = vdwg.mxu0
        %v1137 = vadd.f32 %v1134, %v967
        %v1138 = vmax.f32 %v1137, 0.0
        %v1139 = vpack.c.bf16 %v1138, %v1138
        %s1140 = scalar_lea.vmem %s351, 384 [#allocation7]
        %v1141 = vld [vmem:[%s1140] sm:$0xf]
        %v1142 = vld [vmem:[%s1140 + $0x4] sm:$0xf]
        %v1143 = vld [vmem:[%s1140 + $0x8] sm:$0xf]
        %v1144 = vld [vmem:[%s1140 + $0xc] sm:$0xf]
        %v1145 = vld [vmem:[%s1140 + $0x10] sm:$0xf]
        %v1146 = vld [vmem:[%s1140 + $0x14] sm:$0xf]
        %v1147 = vld [vmem:[%s1140 + $0x18] sm:$0xf]
        %v1148 = vld [vmem:[%s1140 + $0x1c] sm:$0xf]
        %v1149 = vld [vmem:[%s1140 + $0x20] sm:$0xf]
        %v1150 = vld [vmem:[%s1140 + $0x24] sm:$0xf]
        %v1151 = vld [vmem:[%s1140 + $0x28] sm:$0xf]
        %v1152 = vld [vmem:[%s1140 + $0x2c] sm:$0xf]
        %v1153 = vld [vmem:[%s1140 + $0x30] sm:$0xf]
        %v1154 = vld [vmem:[%s1140 + $0x34] sm:$0xf]
        %v1155 = vld [vmem:[%s1140 + $0x38] sm:$0xf]
        %v1156 = vld [vmem:[%s1140 + $0x3c] sm:$0xf]
        %s1157 = scalar_lea.vmem %s361, 6 [#allocation8]
        %v1158 = vld [vmem:[%s1157] sm:$0x1]
        %v1160 = vperm.slane %v1158, 0
        %v1178 = vunpack.c.l.b16 %v1141
        %v1179 = vunpack.c.l.b16 %v1142
        %v1180 = vunpack.c.l.b16 %v1143
        %v1181 = vunpack.c.l.b16 %v1144
        %v1182 = vunpack.c.l.b16 %v1145
        %v1183 = vunpack.c.l.b16 %v1146
        %v1184 = vunpack.c.l.b16 %v1147
        %v1185 = vunpack.c.l.b16 %v1148
        %v1186 = vunpack.c.l.b16 %v1149
        %v1187 = vunpack.c.l.b16 %v1150
        %v1188 = vunpack.c.l.b16 %v1151
        %v1189 = vunpack.c.l.b16 %v1152
        %v1190 = vunpack.c.l.b16 %v1153
        %v1191 = vunpack.c.l.b16 %v1154
        %v1192 = vunpack.c.l.b16 %v1155
        %v1193 = vunpack.c.l.b16 %v1156
        %v1194 = vpack.c.b16 %v1179, %v1178
        %v1195 = vpack.c.b16 %v1181, %v1180
        %v1196 = vpack.c.b16 %v1183, %v1182
        %v1197 = vpack.c.b16 %v1185, %v1184
        %v1198 = vpack.c.b16 %v1187, %v1186
        %v1199 = vpack.c.b16 %v1189, %v1188
        %v1200 = vpack.c.b16 %v1191, %v1190
        %v1201 = vpack.c.b16 %v1193, %v1192
        %1210 = vmatpush.bf16.msra.mxu0 %v1201
        %1211 = vmatpush.bf16.msra.mxu0 %v1200
        %1212 = vmatpush.bf16.msra.mxu0 %v1199
        %1213 = vmatpush.bf16.msra.mxu0 %v1198
        %1214 = vmatpush.bf16.msra.mxu0 %v1197
        %1215 = vmatpush.bf16.msra.mxu0 %v1196
        %1216 = vmatpush.bf16.msra.mxu0 %v1195
        %1217 = vmatpush.bf16.msra.mxu0 %v1194
        %1218 = vmatmul.bf16.gmra.mxu0 %v1139
        %v1219 = vpop.f32.mrf.mxu0
        %v1220 = vadd.f32 %v1160, %v1219
        %v1221 = vpop.f32.mrf.mxu0
        %1222 = vdwg.mxu0
        %v1223 = vmax.f32 %v1220, 0.0
        %v1224 = vpack.c.bf16 %v1223, %v1223
        %s1225 = scalar_lea.vmem %s351, 448 [#allocation7]
        %v1226 = vld [vmem:[%s1225] sm:$0xf]
        %v1227 = vld [vmem:[%s1225 + $0x4] sm:$0xf]
        %v1228 = vld [vmem:[%s1225 + $0x8] sm:$0xf]
        %v1229 = vld [vmem:[%s1225 + $0xc] sm:$0xf]
        %v1230 = vld [vmem:[%s1225 + $0x10] sm:$0xf]
        %v1231 = vld [vmem:[%s1225 + $0x14] sm:$0xf]
        %v1232 = vld [vmem:[%s1225 + $0x18] sm:$0xf]
        %v1233 = vld [vmem:[%s1225 + $0x1c] sm:$0xf]
        %v1234 = vld [vmem:[%s1225 + $0x20] sm:$0xf]
        %v1235 = vld [vmem:[%s1225 + $0x24] sm:$0xf]
        %v1236 = vld [vmem:[%s1225 + $0x28] sm:$0xf]
        %v1237 = vld [vmem:[%s1225 + $0x2c] sm:$0xf]
        %v1238 = vld [vmem:[%s1225 + $0x30] sm:$0xf]
        %v1239 = vld [vmem:[%s1225 + $0x34] sm:$0xf]
        %v1240 = vld [vmem:[%s1225 + $0x38] sm:$0xf]
        %v1241 = vld [vmem:[%s1225 + $0x3c] sm:$0xf]
        %s1242 = scalar_lea.vmem %s361, 7 [#allocation8]
        %v1243 = vld [vmem:[%s1242] sm:$0x1]
        %v1245 = vperm.slane %v1243, 0
        %v1263 = vunpack.c.l.b16 %v1226
        %v1264 = vunpack.c.l.b16 %v1227
        %v1265 = vunpack.c.l.b16 %v1228
        %v1266 = vunpack.c.l.b16 %v1229
        %v1267 = vunpack.c.l.b16 %v1230
        %v1268 = vunpack.c.l.b16 %v1231
        %v1269 = vunpack.c.l.b16 %v1232
        %v1270 = vunpack.c.l.b16 %v1233
        %v1271 = vunpack.c.l.b16 %v1234
        %v1272 = vunpack.c.l.b16 %v1235
        %v1273 = vunpack.c.l.b16 %v1236
        %v1274 = vunpack.c.l.b16 %v1237
        %v1275 = vunpack.c.l.b16 %v1238
        %v1276 = vunpack.c.l.b16 %v1239
        %v1277 = vunpack.c.l.b16 %v1240
        %v1278 = vunpack.c.l.b16 %v1241
        %v1279 = vpack.c.b16 %v1264, %v1263
        %v1280 = vpack.c.b16 %v1266, %v1265
        %v1281 = vpack.c.b16 %v1268, %v1267
        %v1282 = vpack.c.b16 %v1270, %v1269
        %v1283 = vpack.c.b16 %v1272, %v1271
        %v1284 = vpack.c.b16 %v1274, %v1273
        %v1285 = vpack.c.b16 %v1276, %v1275
        %v1286 = vpack.c.b16 %v1278, %v1277
        %1295 = vmatpush.bf16.msra.mxu0 %v1286
        %1296 = vmatpush.bf16.msra.mxu0 %v1285
        %1297 = vmatpush.bf16.msra.mxu0 %v1284
        %1298 = vmatpush.bf16.msra.mxu0 %v1283
        %1299 = vmatpush.bf16.msra.mxu0 %v1282
        %1300 = vmatpush.bf16.msra.mxu0 %v1281
        %1301 = vmatpush.bf16.msra.mxu0 %v1280
        %1302 = vmatpush.bf16.msra.mxu0 %v1279
        %1303 = vmatmul.bf16.gmra.mxu0 %v1224
        %v1304 = vpop.f32.mrf.mxu0
        %v1305 = vadd.f32 %v1245, %v1304
        %v1306 = vpop.f32.mrf.mxu0
        %1307 = vdwg.mxu0
        %v1308 = vadd.f32 %v1305, %v1138
        %v1309 = vmax.f32 %v1308, 0.0
        %1310 = vst [vmem:[#allocation2] sm:$0xff] %v1309
        %p1311 = scmp.eq.s32.totalorder %s21, 1
        // Predicated region
        $region77: #{deep_llm_forward.1} parent=51 // pred_check
          %p1312 = pneg %p1311
        $region78: #{deep_llm_forward.1} parent=51 // pred_check_branch
          %1314 = sbr.rel (%p1312) target = $region80
        $region79: #{deep_llm_forward.1} parent=51 // pred_region
          %v1315 = vpack.c.bf16 %v1309, %v1309
          %v1316 = vld [vmem:[#allocation9] sm:$0xf]
          %v1317 = vld [vmem:[#allocation9 + $0x4] sm:$0xf]
          %v1318 = vld [vmem:[#allocation9 + $0x8] sm:$0xf]
          %v1319 = vld [vmem:[#allocation9 + $0xc] sm:$0xf]
          %v1320 = vld [vmem:[#allocation9 + $0x10] sm:$0xf]
          %v1321 = vld [vmem:[#allocation9 + $0x14] sm:$0xf]
          %v1322 = vld [vmem:[#allocation9 + $0x18] sm:$0xf]
          %v1323 = vld [vmem:[#allocation9 + $0x1c] sm:$0xf]
          %v1324 = vld [vmem:[#allocation9 + $0x20] sm:$0xf]
          %v1325 = vld [vmem:[#allocation9 + $0x24] sm:$0xf]
          %v1326 = vld [vmem:[#allocation9 + $0x28] sm:$0xf]
          %v1327 = vld [vmem:[#allocation9 + $0x2c] sm:$0xf]
          %v1328 = vld [vmem:[#allocation9 + $0x30] sm:$0xf]
          %v1329 = vld [vmem:[#allocation9 + $0x34] sm:$0xf]
          %v1330 = vld [vmem:[#allocation9 + $0x38] sm:$0xf]
          %v1331 = vld [vmem:[#allocation9 + $0x3c] sm:$0xf]
          %v1332 = vld [vmem:[%s7] sm:$0x1]
          %v1334 = vperm.slane %v1332, 0
          %v1352 = vunpack.c.l.b16 %v1316
          %v1353 = vunpack.c.l.b16 %v1317
          %v1354 = vunpack.c.l.b16 %v1318
          %v1355 = vunpack.c.l.b16 %v1319
          %v1356 = vunpack.c.l.b16 %v1320
          %v1357 = vunpack.c.l.b16 %v1321
          %v1358 = vunpack.c.l.b16 %v1322
          %v1359 = vunpack.c.l.b16 %v1323
          %v1360 = vunpack.c.l.b16 %v1324
          %v1361 = vunpack.c.l.b16 %v1325
          %v1362 = vunpack.c.l.b16 %v1326
          %v1363 = vunpack.c.l.b16 %v1327
          %v1364 = vunpack.c.l.b16 %v1328
          %v1365 = vunpack.c.l.b16 %v1329
          %v1366 = vunpack.c.l.b16 %v1330
          %v1367 = vunpack.c.l.b16 %v1331
          %v1368 = vpack.c.b16 %v1353, %v1352
          %v1369 = vpack.c.b16 %v1355, %v1354
          %v1370 = vpack.c.b16 %v1357, %v1356
          %v1371 = vpack.c.b16 %v1359, %v1358
          %v1372 = vpack.c.b16 %v1361, %v1360
          %v1373 = vpack.c.b16 %v1363, %v1362
          %v1374 = vpack.c.b16 %v1365, %v1364
          %v1375 = vpack.c.b16 %v1367, %v1366
          %1384 = vmatpush.bf16.msra.mxu0 %v1375
          %1385 = vmatpush.bf16.msra.mxu0 %v1374
          %1386 = vmatpush.bf16.msra.mxu0 %v1373
          %1387 = vmatpush.bf16.msra.mxu0 %v1372
          %1388 = vmatpush.bf16.msra.mxu0 %v1371
          %1389 = vmatpush.bf16.msra.mxu0 %v1370
          %1390 = vmatpush.bf16.msra.mxu0 %v1369
          %1391 = vmatpush.bf16.msra.mxu0 %v1368
          %1392 = vmatmul.bf16.gmra.mxu0 %v1315
          %v1393 = vpop.f32.mrf.mxu0
          %v1394 = vadd.f32 %v1334, %v1393
          %v1395 = vpop.f32.mrf.mxu0
          %1396 = vdwg.mxu0
          %1397 = vst [vmem:[%s8] sm:$0xff] %v1394
        $region80: #{deep_llm_forward.1} parent=51 // pred_fallthru
          _
        // Predicated region
        $region81: #{deep_llm_forward.1} parent=51 // pred_check
          %p1398 = pneg %p212
        $region82: #{deep_llm_forward.1} parent=51 // pred_check_branch
          %1400 = sbr.rel (%p1398) target = $region84
        $region83: #{deep_llm_forward.1} parent=51 // pred_region
          _
        $region84: #{deep_llm_forward.1} parent=51 // pred_fallthru
          _
        // Predicated region
        $region85: #{deep_llm_forward.1} parent=51 // pred_check
          %p1401 = pneg %p212
        $region86: #{deep_llm_forward.1} parent=51 // pred_check_branch
          %1403 = sbr.rel (%p1401) target = $region88
        $region87: #{deep_llm_forward.1} parent=51 // pred_region
          _
        $region88: #{deep_llm_forward.1} parent=51 // pred_fallthru
          _
      $region52: #{deep_llm_forward.1} parent=5 // pred_fallthru
        _
      %p1404 = scmp.le.s32.totalorder 2, %s16
      // Predicated region
      $region89: #{deep_llm_forward.1} parent=5 // pred_check
        %p1405 = pneg %p1404
      $region90: #{deep_llm_forward.1} parent=5 // pred_check_branch
        %1407 = sbr.rel (%p1405) target = $region92
      $region91: #{deep_llm_forward.1} parent=5 // pred_region
        %s1408 = ssub.s32 %s16, 2
      $region92: #{deep_llm_forward.1} parent=5 // pred_fallthru
        _
    $region6: #{deep_llm_forward.1} parent=1 // loop_footer
      %s20 = sadd.s32 1, %s16
    $region7: #{deep_llm_forward.1} parent=1 // loop_footer_branch
      %15 = sbr.rel target = $region3
    $region8: #{deep_llm_forward.1} parent=1 // loop_exit
      _
    %1409 = vsyncpa [#allocation4], 1
    %s1410 = scalar_lea.sflag [#allocation4], 1
    %1411 = vsyncpa %s1410, 1
    %1412 = vsyncpa [#allocation6], 1

</llo_original>
